<compile_context>
chip_gen: v5e
topology: v5e:2x2
jax: 0.10.0
libtpu: 0.0.40
codegen_flags: <defaults>
</compile_context>

<pallas_src>
import functools

import jax
import jax.numpy as jnp
import numpy as np
from jax import lax
from jax.experimental import pallas as pl
from jax.experimental.pallas import tpu as pltpu

EPS = 1e-5


def _dense_bc_kernel(x_ref, w1s_ref, t1_ref, w2s_ref, t2_ref, mask_ref,
                     out_ref, colt_ref, *, width, images_per_step):
    # Per grid step (images_per_step images), channel-first 2D layouts:
    #   x_ref   : (Nb, C, HW)     input images, pixels on the 128-lane axis
    #   w1s_ref : (C4, C)         1x1 conv weight with BN1 scale folded in
    #   t1_ref  : (C4, 1)         fused conv-bias + BN1 shift
    #   w2s_ref : (3*128, 128)    3x3 conv weight, BN2 scale folded, zero
    #                             padded to aligned K (384) and N (128)
    #   t2_ref  : (G, 1)          fused conv-bias + BN2 shift
    #   mask_ref: (9, HW)         per-tap 0/1 boundary masks (padding = 1)
    #   out_ref : (Nb, G, HW)     lane-dense output (unmasked vst)
    #   colt_ref: (HW, 3*128)     VMEM im2col slab, reused across images/steps
    C4 = w1s_ref.shape[0]
    HW = x_ref.shape[2]
    G = t2_ref.shape[0]
    grp_pad = colt_ref.shape[1] // 3          # rows per dh group (128)

    # Hoisted constants (created once; reused by every unrolled image iter —
    # broadcasts are not CSE'd, so don't build them inside the loop).
    n_zero = grp_pad - 3 * C4
    zpad = jnp.zeros((n_zero, HW), jnp.float32) if n_zero > 0 else None

    def one_image(i, carry):
        # ---- 1x1 conv (BN1 scale already folded into weight) + shift + ReLU
        xi = x_ref[i]                                              # (C, HW)
        t = jnp.dot(w1s_ref[...], xi, preferred_element_type=jnp.float32)
        t = jnp.maximum(t + t1_ref[...], 0.0)                      # (C4, HW)

        # ---- im2col slab (HW, 3*128), built one dh row-group at a time ----
        # Each spatial tap is a lane rotation of t (XLU slot) plus a static
        # 0/1 boundary mask.  Only 3 taps (+ zero pad) are live at once; each
        # group is transposed on aligned (8,128) tiles and stored into the
        # VMEM slab with 128-lane-aligned, unmasked stores.
        for g in range(3):                                         # ddh = g-1
            parts = []
            for j in range(3):                                     # ddw = j-1
                off = (g - 1) * width + (j - 1)
                if off == 0:
                    parts.append(t)                      # centre tap: no shift
                else:
                    tap = g * 3 + j
                    shifted = pltpu.roll(t, (-off) % HW, axis=1)
                    parts.append(shifted * mask_ref[tap:tap + 1, :])
            if zpad is not None:
                parts.append(zpad)
            grp = jnp.concatenate(parts, axis=0)                   # (128, HW)
            colt_ref[:, g * grp_pad:(g + 1) * grp_pad] = jnp.transpose(grp)

        # ---- 3x3 conv as ONE flipped matmul --------------------------------
        # LHS = im2col activation (M = HW = 256 streamed rows), RHS = small
        # padded weight (K = 384, N = 128) is the MXU-stationary operand.
        res = jnp.dot(colt_ref[...], w2s_ref[...],
                      preferred_element_type=jnp.float32)          # (HW, 128)
        y = jnp.transpose(res)                                     # (128, HW)
        y = jnp.maximum(y[0:G, :] + t2_ref[...], 0.0)              # (G, HW)
        out_ref[i] = y.astype(out_ref.dtype)
        return carry

    lax.fori_loop(0, images_per_step, one_image, 0, unroll=True)


def _pick_images_per_step(n):
    """Largest Nb <= 8 dividing N while keeping >= 2 grid steps (v7x 2 TCs)."""
    best = 1
    for nb in range(1, min(8, n) + 1):
        if n % nb == 0 and n // nb >= 2:
            best = nb
    return best


def denselayer_bc_forward(x_nchw, params):
    """x_nchw: (N, C, H, W) float32.  Returns (N, C + growth, H, W)."""
    (w1, b1, g1, be1, m1, v1,
     w2, b2, g2, be2, m2, v2) = params
    N, C, H, W = x_nchw.shape
    C4 = w1.shape[1]
    G = w2.shape[3]
    HW = H * W

    grp_pad = ((3 * C4 + 127) // 128) * 128       # K rows per dh group (128)
    n_pad = ((G + 127) // 128) * 128              # padded output columns (128)

    # Fold conv bias + eval-mode BN into a per-channel scale (into weights)
    # and an additive shift (kept in-kernel).
    s1 = g1 / jnp.sqrt(v1 + EPS)
    t1 = be1 + s1 * (b1 - m1)
    s2 = g2 / jnp.sqrt(v2 + EPS)
    t2 = be2 + s2 * (b2 - m2)

    # 1x1 conv weight, BN1 scale folded, (out, in) layout.
    w1s = jnp.transpose(w1 * s1[None, :], (1, 0))                  # (C4, C)

    # 3x3 conv weight, BN2 scale folded, laid out to match the im2col slab:
    # row index = kh*grp_pad + kw*C4 + cin (pad rows zero), columns padded
    # from G to 128 so the flipped matmul result transposes on aligned tiles.
    w2s = (w2 * s2[None, None, None, :]).reshape(3, 3 * C4, G)     # (3,96,G)
    w2s = jnp.pad(w2s, ((0, 0), (0, grp_pad - 3 * C4), (0, n_pad - G)))
    w2s = w2s.reshape(3 * grp_pad, n_pad)                          # (384,128)

    # Channel-first, lane-dense activation layout (free reshape, no HBM
    # transpose on the activations).
    x2d = x_nchw.reshape(N, C, HW)

    # Static per-tap boundary masks for padding=1 (tap order: ddh-major).
    hh = np.arange(H)[:, None]
    ww = np.arange(W)[None, :]
    mask_list = []
    for ddh in (-1, 0, 1):
        for ddw in (-1, 0, 1):
            m = ((hh + ddh >= 0) & (hh + ddh < H) &
                 (ww + ddw >= 0) & (ww + ddw < W))
            mask_list.append(m.reshape(-1))
    masks = jnp.asarray(np.stack(mask_list).astype(np.float32))    # (9, HW)

    nb = _pick_images_per_step(N)
    grid = N // nb

    kernel = functools.partial(_dense_bc_kernel, width=W, images_per_step=nb)

    out2d = pl.pallas_call(
        kernel,
        out_shape=jax.ShapeDtypeStruct((N, G, HW), jnp.float32),
        grid_spec=pltpu.PrefetchScalarGridSpec(
            num_scalar_prefetch=0,
            grid=(grid,),
            in_specs=[
                pl.BlockSpec((nb, C, HW), lambda n: (n, 0, 0)),
                # Constant-index operands: stay resident in VMEM across steps.
                pl.BlockSpec((C4, C), lambda n: (0, 0)),
                pl.BlockSpec((C4, 1), lambda n: (0, 0)),
                pl.BlockSpec((3 * grp_pad, n_pad), lambda n: (0, 0)),
                pl.BlockSpec((G, 1), lambda n: (0, 0)),
                pl.BlockSpec((9, HW), lambda n: (0, 0)),
            ],
            out_specs=pl.BlockSpec((nb, G, HW), lambda n: (n, 0, 0)),
            scratch_shapes=[pltpu.VMEM((HW, 3 * grp_pad), jnp.float32)],
        ),
        compiler_params=pltpu.CompilerParams(
            dimension_semantics=("parallel",)),
    )(x2d, w1s, t1.reshape(C4, 1), w2s, t2.reshape(G, 1), masks)

    out_nchw = out2d.reshape(N, G, H, W)                           # free reshape
    # DenseNet concat along channel dim (plain-JAX glue).
    return jnp.concatenate([x_nchw, out_nchw], axis=1)


def _reference(x_nchw, params):
    """Pure-JAX reference (eval-mode Dropout = identity)."""
    (w1, b1, g1, be1, m1, v1,
     w2, b2, g2, be2, m2, v2) = params
    w1_oihw = jnp.transpose(w1, (1, 0))[:, :, None, None]          # (C4, C, 1, 1)
    w2_oihw = jnp.transpose(w2, (3, 2, 0, 1))                      # (G, C4, 3, 3)
    dn = ('NCHW', 'OIHW', 'NCHW')

    y = lax.conv_general_dilated(x_nchw, w1_oihw, (1, 1), 'VALID',
                                 dimension_numbers=dn)
    y = y + b1[None, :, None, None]
    y = g1[None, :, None, None] * (y - m1[None, :, None, None]) / \
        jnp.sqrt(v1[None, :, None, None] + EPS) + be1[None, :, None, None]
    y = jnp.maximum(y, 0.0)

    z = lax.conv_general_dilated(y, w2_oihw, (1, 1), ((1, 1), (1, 1)),
                                 dimension_numbers=dn)
    z = z + b2[None, :, None, None]
    z = g2[None, :, None, None] * (z - m2[None, :, None, None]) / \
        jnp.sqrt(v2[None, :, None, None] + EPS) + be2[None, :, None, None]
    z = jnp.maximum(z, 0.0)
    return jnp.concatenate([x_nchw, z], axis=1)


if __name__ == "__main__":
    # Small shapes consistent with the module: inChannel=4, growth_rate=8.
    N, C, H, W = 2, 4, 16, 16
    G = 8
    C4 = 4 * G

    key = jax.random.PRNGKey(0)
    ks = jax.random.split(key, 11)
    w1 = jax.random.normal(ks[0], (C, C4), jnp.float32) * 0.1       # 1x1 conv (in,out)
    b1 = jax.random.normal(ks[1], (C4,), jnp.float32) * 0.1
    g1 = 1.0 + 0.1 * jax.random.normal(ks[2], (C4,), jnp.float32)   # BN1 gamma
    be1 = 0.1 * jax.random.normal(ks[3], (C4,), jnp.float32)        # BN1 beta
    m1 = 0.1 * jax.random.normal(ks[4], (C4,), jnp.float32)         # BN1 running_mean
    v1 = jnp.abs(jax.random.normal(ks[5], (C4,), jnp.float32)) + 0.5  # BN1 running_var

    w2 = jax.random.normal(ks[6], (3, 3, C4, G), jnp.float32) * 0.1  # 3x3 conv (kh,kw,in,out)
    b2 = jax.random.normal(ks[7], (G,), jnp.float32) * 0.1
    g2 = 1.0 + 0.1 * jax.random.normal(ks[8], (G,), jnp.float32)
    be2 = 0.1 * jax.random.normal(ks[9], (G,), jnp.float32)
    m2 = 0.05 * jnp.arange(G, dtype=jnp.float32)
    v2 = 0.5 + 0.1 * jnp.arange(G, dtype=jnp.float32)

    params = (w1, b1, g1, be1, m1, v1, w2, b2, g2, be2, m2, v2)

    x = jax.random.normal(ks[10], (N, C, H, W), jnp.float32)

    # TODO(synk): Dropout2d is modeled in eval mode (identity); training-mode
    # channel dropout would need an in-kernel PRNG mask (pltpu.prng_random_bits).
    out = jax.block_until_ready(denselayer_bc_forward(x, params))
    ref = jax.block_until_ready(_reference(x, params))

    assert out.shape == (N, C + G, H, W), out.shape
    assert np.allclose(np.asarray(out), np.asarray(ref), atol=1e-4, rtol=1e-4)
    print("KERNEL_OK")
</pallas_src>

<mosaic_0001>
module attributes {stable_mosaic.version = 11 : i64} {
  func.func @_dense_bc_kernel(%arg0: i32, %arg1: memref<1x4x256xf32, #tpu.memory_space<vmem>>, %arg2: memref<32x4xf32, #tpu.memory_space<vmem>>, %arg3: memref<32x1xf32, #tpu.memory_space<vmem>>, %arg4: memref<384x128xf32, #tpu.memory_space<vmem>>, %arg5: memref<8x1xf32, #tpu.memory_space<vmem>>, %arg6: memref<9x256xf32, #tpu.memory_space<vmem>>, %arg7: memref<1x8x256xf32, #tpu.memory_space<vmem>>, %arg8: memref<256x384xf32, #tpu.memory_space<vmem>>) attributes {dimension_semantics = [#tpu.dimension_semantics<parallel>], iteration_bounds = array<i64: 2>, scalar_prefetch = 0 : i64, scratch_operands = 1 : i64, tpu.core_type = #tpu.core_type<tc>, window_params = [{transform_indices = @transform_0, window_bounds = array<i64: 1, 4, 256>}, {pipeline_mode = #tpu.pipeline_mode<synchronous>, transform_indices = @transform_1, window_bounds = array<i64: 32, 4>}, {pipeline_mode = #tpu.pipeline_mode<synchronous>, transform_indices = @transform_2, window_bounds = array<i64: 32, 1>}, {pipeline_mode = #tpu.pipeline_mode<synchronous>, transform_indices = @transform_3, window_bounds = array<i64: 384, 128>}, {pipeline_mode = #tpu.pipeline_mode<synchronous>, transform_indices = @transform_4, window_bounds = array<i64: 8, 1>}, {pipeline_mode = #tpu.pipeline_mode<synchronous>, transform_indices = @transform_5, window_bounds = array<i64: 9, 256>}, {transform_indices = @transform_6, window_bounds = array<i64: 1, 8, 256>}]} {
    %cst = arith.constant 0.000000e+00 : f32
    %0 = vector.broadcast %cst : f32 to vector<32x256xf32>
    %c0_i32 = arith.constant 0 : i32
    %1 = arith.index_cast %c0_i32 : i32 to index
    %c0 = arith.constant 0 : index
    %c0_0 = arith.constant 0 : index
    %2 = vector.load %arg1[%1, %c0, %c0_0] : memref<1x4x256xf32, #tpu.memory_space<vmem>>, vector<1x4x256xf32>
    %3 = vector.shape_cast %2 : vector<1x4x256xf32> to vector<4x256xf32>
    %c0_1 = arith.constant 0 : index
    %c0_2 = arith.constant 0 : index
    %4 = vector.load %arg2[%c0_1, %c0_2] : memref<32x4xf32, #tpu.memory_space<vmem>>, vector<32x4xf32>
    %cst_3 = arith.constant dense<0.000000e+00> : vector<32x256xf32>
    %5 = tpu.matmul %4, %3, %cst_3 {dimension_numbers = #tpu.dot_dimension_numbers<[1], [0], [0], [1], [0, 0, 1, 1], [], []>} : vector<32x4xf32>, vector<4x256xf32>, vector<32x256xf32> -> vector<32x256xf32>
    %c0_4 = arith.constant 0 : index
    %c0_5 = arith.constant 0 : index
    %6 = vector.load %arg3[%c0_4, %c0_5] : memref<32x1xf32, #tpu.memory_space<vmem>>, vector<32x1xf32>
    %7 = vector.broadcast %6 : vector<32x1xf32> to vector<32x256xf32>
    %8 = arith.addf %5, %7 : vector<32x256xf32>
    %cst_6 = arith.constant 0.000000e+00 : f32
    %9 = vector.broadcast %cst_6 : f32 to vector<32x256xf32>
    %10 = arith.maximumf %8, %9 : vector<32x256xf32>
    %c17_i32 = arith.constant 17 : i32
    %11 = tpu.dynamic_rotate %10 by %c17_i32 dim 1 : vector<32x256xf32>, i32 -> vector<32x256xf32>
    %c0_7 = arith.constant 0 : index
    %c0_8 = arith.constant 0 : index
    %12 = vector.load %arg6[%c0_7, %c0_8] : memref<9x256xf32, #tpu.memory_space<vmem>>, vector<1x256xf32>
    %13 = vector.broadcast %12 : vector<1x256xf32> to vector<32x256xf32>
    %14 = arith.mulf %11, %13 : vector<32x256xf32>
    %c16_i32 = arith.constant 16 : i32
    %15 = tpu.dynamic_rotate %10 by %c16_i32 dim 1 : vector<32x256xf32>, i32 -> vector<32x256xf32>
    %c1 = arith.constant 1 : index
    %c0_9 = arith.constant 0 : index
    %16 = vector.load %arg6[%c1, %c0_9] : memref<9x256xf32, #tpu.memory_space<vmem>>, vector<1x256xf32>
    %17 = vector.broadcast %16 : vector<1x256xf32> to vector<32x256xf32>
    %18 = arith.mulf %15, %17 : vector<32x256xf32>
    %c15_i32 = arith.constant 15 : i32
    %19 = tpu.dynamic_rotate %10 by %c15_i32 dim 1 : vector<32x256xf32>, i32 -> vector<32x256xf32>
    %c2 = arith.constant 2 : index
    %c0_10 = arith.constant 0 : index
    %20 = vector.load %arg6[%c2, %c0_10] : memref<9x256xf32, #tpu.memory_space<vmem>>, vector<1x256xf32>
    %21 = vector.broadcast %20 : vector<1x256xf32> to vector<32x256xf32>
    %22 = arith.mulf %19, %21 : vector<32x256xf32>
    %23 = tpu.concatenate %14, %18, %22, %0 in 0 : vector<32x256xf32>, vector<32x256xf32>, vector<32x256xf32>, vector<32x256xf32> -> vector<128x256xf32>
    %24 = tpu.transpose %23, [1, 0] : vector<128x256xf32> -> vector<256x128xf32>
    %c0_11 = arith.constant 0 : index
    %c0_12 = arith.constant 0 : index
    %25 = vector.load %arg8[%c0_11, %c0_12] : memref<256x384xf32, #tpu.memory_space<vmem>>, vector<256x128xf32>
    tpu.vector_store %arg8[%c0_11, %c0_12], %24 {strides = array<i32>} : memref<256x384xf32, #tpu.memory_space<vmem>>, vector<256x128xf32>,
    %c1_i32 = arith.constant 1 : i32
    %26 = tpu.dynamic_rotate %10 by %c1_i32 dim 1 : vector<32x256xf32>, i32 -> vector<32x256xf32>
    %c3 = arith.constant 3 : index
    %c0_13 = arith.constant 0 : index
    %27 = vector.load %arg6[%c3, %c0_13] : memref<9x256xf32, #tpu.memory_space<vmem>>, vector<1x256xf32>
    %28 = vector.broadcast %27 : vector<1x256xf32> to vector<32x256xf32>
    %29 = arith.mulf %26, %28 : vector<32x256xf32>
    %c255_i32 = arith.constant 255 : i32
    %30 = tpu.dynamic_rotate %10 by %c255_i32 dim 1 : vector<32x256xf32>, i32 -> vector<32x256xf32>
    %c5 = arith.constant 5 : index
    %c0_14 = arith.constant 0 : index
    %31 = vector.load %arg6[%c5, %c0_14] : memref<9x256xf32, #tpu.memory_space<vmem>>, vector<1x256xf32>
    %32 = vector.broadcast %31 : vector<1x256xf32> to vector<32x256xf32>
    %33 = arith.mulf %30, %32 : vector<32x256xf32>
    %34 = tpu.concatenate %29, %10, %33, %0 in 0 : vector<32x256xf32>, vector<32x256xf32>, vector<32x256xf32>, vector<32x256xf32> -> vector<128x256xf32>
    %35 = tpu.transpose %34, [1, 0] : vector<128x256xf32> -> vector<256x128xf32>
    %c0_15 = arith.constant 0 : index
    %c128 = arith.constant 128 : index
    %36 = vector.load %arg8[%c0_15, %c128] : memref<256x384xf32, #tpu.memory_space<vmem>>, vector<256x128xf32>
    tpu.vector_store %arg8[%c0_15, %c128], %35 {strides = array<i32>} : memref<256x384xf32, #tpu.memory_space<vmem>>, vector<256x128xf32>,
    %c241_i32 = arith.constant 241 : i32
    %37 = tpu.dynamic_rotate %10 by %c241_i32 dim 1 : vector<32x256xf32>, i32 -> vector<32x256xf32>
    %c6 = arith.constant 6 : index
    %c0_16 = arith.constant 0 : index
    %38 = vector.load %arg6[%c6, %c0_16] : memref<9x256xf32, #tpu.memory_space<vmem>>, vector<1x256xf32>
    %39 = vector.broadcast %38 : vector<1x256xf32> to vector<32x256xf32>
    %40 = arith.mulf %37, %39 : vector<32x256xf32>
    %c240_i32 = arith.constant 240 : i32
    %41 = tpu.dynamic_rotate %10 by %c240_i32 dim 1 : vector<32x256xf32>, i32 -> vector<32x256xf32>
    %c7 = arith.constant 7 : index
    %c0_17 = arith.constant 0 : index
    %42 = vector.load %arg6[%c7, %c0_17] : memref<9x256xf32, #tpu.memory_space<vmem>>, vector<1x256xf32>
    %43 = vector.broadcast %42 : vector<1x256xf32> to vector<32x256xf32>
    %44 = arith.mulf %41, %43 : vector<32x256xf32>
    %c239_i32 = arith.constant 239 : i32
    %45 = tpu.dynamic_rotate %10 by %c239_i32 dim 1 : vector<32x256xf32>, i32 -> vector<32x256xf32>
    %c8 = arith.constant 8 : index
    %c0_18 = arith.constant 0 : index
    %46 = vector.load %arg6[%c8, %c0_18] : memref<9x256xf32, #tpu.memory_space<vmem>>, vector<1x256xf32>
    %47 = vector.broadcast %46 : vector<1x256xf32> to vector<32x256xf32>
    %48 = arith.mulf %45, %47 : vector<32x256xf32>
    %49 = tpu.concatenate %40, %44, %48, %0 in 0 : vector<32x256xf32>, vector<32x256xf32>, vector<32x256xf32>, vector<32x256xf32> -> vector<128x256xf32>
    %50 = tpu.transpose %49, [1, 0] : vector<128x256xf32> -> vector<256x128xf32>
    %c0_19 = arith.constant 0 : index
    %c256 = arith.constant 256 : index
    %51 = vector.load %arg8[%c0_19, %c256] : memref<256x384xf32, #tpu.memory_space<vmem>>, vector<256x128xf32>
    tpu.vector_store %arg8[%c0_19, %c256], %50 {strides = array<i32>} : memref<256x384xf32, #tpu.memory_space<vmem>>, vector<256x128xf32>,
    %c0_20 = arith.constant 0 : index
    %c0_21 = arith.constant 0 : index
    %52 = vector.load %arg8[%c0_20, %c0_21] : memref<256x384xf32, #tpu.memory_space<vmem>>, vector<256x384xf32>
    %c0_22 = arith.constant 0 : index
    %c0_23 = arith.constant 0 : index
    %53 = vector.load %arg4[%c0_22, %c0_23] : memref<384x128xf32, #tpu.memory_space<vmem>>, vector<384x128xf32>
    %cst_24 = arith.constant dense<0.000000e+00> : vector<256x128xf32>
    %54 = tpu.matmul %52, %53, %cst_24 {dimension_numbers = #tpu.dot_dimension_numbers<[1], [0], [0], [1], [0, 0, 1, 1], [], []>} : vector<256x384xf32>, vector<384x128xf32>, vector<256x128xf32> -> vector<256x128xf32>
    %55 = tpu.transpose %54, [1, 0] : vector<256x128xf32> -> vector<128x256xf32>
    %56 = vector.extract_strided_slice %55 {offsets = [0, 0], sizes = [8, 256], strides = [1, 1]} : vector<128x256xf32> to vector<8x256xf32>
    %c0_25 = arith.constant 0 : index
    %c0_26 = arith.constant 0 : index
    %57 = vector.load %arg5[%c0_25, %c0_26] : memref<8x1xf32, #tpu.memory_space<vmem>>, vector<8x1xf32>
    %58 = vector.broadcast %57 : vector<8x1xf32> to vector<8x256xf32>
    %59 = arith.addf %56, %58 : vector<8x256xf32>
    %cst_27 = arith.constant 0.000000e+00 : f32
    %60 = vector.broadcast %cst_27 : f32 to vector<8x256xf32>
    %61 = arith.maximumf %59, %60 : vector<8x256xf32>
    %62 = arith.index_cast %c0_i32 : i32 to index
    %c0_28 = arith.constant 0 : index
    %c0_29 = arith.constant 0 : index
    %63 = vector.load %arg7[%62, %c0_28, %c0_29] : memref<1x8x256xf32, #tpu.memory_space<vmem>>, vector<1x8x256xf32>
    %64 = vector.shape_cast %63 : vector<1x8x256xf32> to vector<8x256xf32>
    %65 = vector.shape_cast %61 : vector<8x256xf32> to vector<1x8x256xf32>
    tpu.vector_store %arg7[%62, %c0_28, %c0_29], %65 {strides = array<i32>} : memref<1x8x256xf32, #tpu.memory_space<vmem>>, vector<1x8x256xf32>,
    %c1_i32_30 = arith.constant 1 : i32
    return
  }
  func.func @transform_0(%arg0: i32) -> (i32, i32, i32) {
    %c0_i32 = arith.constant 0 : i32
    %c0_i32_0 = arith.constant 0 : i32
    %c0_i32_1 = arith.constant 0 : i32
    return %arg0, %c0_i32, %c0_i32_0 : i32, i32, i32
  }
  func.func @transform_1(%arg0: i32) -> (i32, i32) {
    %c0_i32 = arith.constant 0 : i32
    %c0_i32_0 = arith.constant 0 : i32
    %c0_i32_1 = arith.constant 0 : i32
    return %c0_i32, %c0_i32_0 : i32, i32
  }
  func.func @transform_2(%arg0: i32) -> (i32, i32) {
    %c0_i32 = arith.constant 0 : i32
    %c0_i32_0 = arith.constant 0 : i32
    %c0_i32_1 = arith.constant 0 : i32
    return %c0_i32, %c0_i32_0 : i32, i32
  }
  func.func @transform_3(%arg0: i32) -> (i32, i32) {
    %c0_i32 = arith.constant 0 : i32
    %c0_i32_0 = arith.constant 0 : i32
    %c0_i32_1 = arith.constant 0 : i32
    return %c0_i32, %c0_i32_0 : i32, i32
  }
  func.func @transform_4(%arg0: i32) -> (i32, i32) {
    %c0_i32 = arith.constant 0 : i32
    %c0_i32_0 = arith.constant 0 : i32
    %c0_i32_1 = arith.constant 0 : i32
    return %c0_i32, %c0_i32_0 : i32, i32
  }
  func.func @transform_5(%arg0: i32) -> (i32, i32) {
    %c0_i32 = arith.constant 0 : i32
    %c0_i32_0 = arith.constant 0 : i32
    %c0_i32_1 = arith.constant 0 : i32
    return %c0_i32, %c0_i32_0 : i32, i32
  }
  func.func @transform_6(%arg0: i32) -> (i32, i32, i32) {
    %c0_i32 = arith.constant 0 : i32
    %c0_i32_0 = arith.constant 0 : i32
    %c0_i32_1 = arith.constant 0 : i32
    return %arg0, %c0_i32, %c0_i32_0 : i32, i32, i32
  }
}

</mosaic_0001>

<llo_original>
// kernel: tpu_custom_call.1
$region0: #{tpu_custom_call.1}
  #allocation0 [shape = 'u32[]', space=smem, size = 0x4, offset = 0x4, fixed_abs, tag = 'smem constant byte address 0x4 - core index']
  #allocation1 [shape = 'u32[72,128]{1,0:T(1,128)}', space=vmem, size = 0x9000, scoped, tag = 'internal scratch']
  #allocation2 [shape = 'f32[256,384]{1,0:T(8,128)}', space=vmem, size = 0x60000, scoped, tag = 'scratch operand']
  %s0 = inlined_call_operand.vmem [shape: f32[2,4,256], index: 0, kind: input, shape index: {}]
  %s1 = inlined_call_operand.vmem [shape: f32[32,4], index: 1, kind: input, shape index: {}]
  %s2 = inlined_call_operand.vmem [shape: f32[32,1], index: 2, kind: input, shape index: {}]
  %s3 = inlined_call_operand.hbm [shape: f32[384,128], index: 3, kind: input, shape index: {}]
  %s4 = inlined_call_operand.vmem [shape: f32[8,1], index: 4, kind: input, shape index: {}]
  %s5 = inlined_call_operand.vmem [shape: f32[9,256], index: 5, kind: input, shape index: {}]
  %s6 = inlined_call_operand.hbm [shape: f32[2,8,256], index: 6, kind: output, shape index: {}]
  %s7 = sld [smem:[#allocation0]]
  $region61: #{tpu_custom_call.1} parent=0
    _
  %s9 = ssub.s32 1, %s7
  %s10 = scalar_select 0, %s9, %s7
  $region1: #{tpu_custom_call.1} parent=0
    #allocation3 [shape = 'u8[196608]{0}', space=vmem, size = 0x30000, scoped, tag = 'input window, operand 3, single buffered']
    #allocation4 [shape = 's32[2]{0}', space=sflag, size = 0x8, scoped, tag = 'scoped memory for tpu_custom_call.1']
    #allocation5 [shape = 's32[2]{0}', space=sflag, size = 0x8, scoped, tag = 'scoped memory for tpu_custom_call.1']
    #allocation6 [shape = 'u8[16384]{0}', space=vmem, size = 0x4000, scoped, tag = 'output window, operand 0']
    %11 = vsyncpa [#allocation4], 0
    %12 = vsyncpa [#allocation5], 0
    %s13 = scalar_lea.sflag [#allocation5], 1
    %14 = vsyncpa %s13, 0
    loop: start=0, step=1, limit=4
    $region2: #{tpu_custom_call.1} parent=1 // loop_pre_header
      _
    $region3: #{tpu_custom_call.1} parent=1 // loop_header
      %s16 = sphi 0, %s20
      %p17 = scmp.ge.s32.totalorder %s16, 4
      %s26 = sphi 0, %s28
      %s29 = sphi 0, %s26
      %s30 = sphi 0, %s29
      %s46 = sphi 0, %s30
      %s50 = sphi 0, %s50
      %s52 = sphi 0, %s50
      %s53 = sphi 0, %s52
      %s67 = sphi 0, %s53
      %s71 = sphi 0, %s71
      %s73 = sphi 0, %s71
      %s74 = sphi 0, %s73
      %s88 = sphi 0, %s74
      %s92 = sphi 0, %s92
      %s94 = sphi 0, %s92
      %s95 = sphi 0, %s94
      %s109 = sphi 0, %s95
      %s113 = sphi 0, %s113
      %s115 = sphi 0, %s113
      %s116 = sphi 0, %s115
      %s130 = sphi 0, %s116
      %s134 = sphi 0, %s134
      %s136 = sphi 0, %s134
      %s137 = sphi 0, %s136
      %s151 = sphi 0, %s137
      %s157 = sphi 0, %s159
      %s160 = sphi 0, %s157
      %s161 = sphi 0, %s160
      %s177 = sphi 0, %s161
    $region4: #{tpu_custom_call.1} parent=1 // loop_header_branch
      %19 = sbr.rel (%p17) target = $region8
    $region5: #{tpu_custom_call.1} parent=1 // loop_body
      %s21 = ssub.s32 %s16, 1
      %s22 = ssub.s32 %s16, 2
      %s23 = sadd.s32 %s16, 1
      %s24 = ssub.s32 %s16, %s23
      %p25 = scmp.eq.s32.totalorder %s24, 0
      %s27 = sadd.s32 %s26, 1
      %s28 = scalar_select %p25, %s26, %s27
      %p31 = pneg %p25
      %p32 = scmp.eq.s32.totalorder %s16, 1
      %p33 = por %p31, %p32
      %p34 = scmp.ne.s32.totalorder %s26, %s29
      %p35 = scmp.eq.s32.totalorder %s16, 0
      %p36 = por %p34, %p35
      %p37 = scmp.ne.s32.totalorder %s26, %s29
      %p38 = scmp.eq.s32.totalorder %s21, 1
      %p39 = por %p37, %p38
      %p40 = scmp.ne.s32.totalorder %s29, %s30
      %p41 = scmp.eq.s32.totalorder %s21, 0
      %p42 = por %p40, %p41
      %p43 = scmp.ne.s32.totalorder %s29, %s30
      %p44 = scmp.eq.s32.totalorder %s22, 1
      %p45 = por %p43, %p44
      %p47 = scmp.ne.s32.totalorder %s30, %s46
      %p48 = scmp.eq.s32.totalorder %s22, 0
      %p49 = por %p47, %p48
      %s51 = sadd.s32 %s50, 1
      %p54 = scmp.eq.s32.totalorder %s16, 1
      %p55 = scmp.ne.s32.totalorder %s50, %s52
      %p56 = scmp.eq.s32.totalorder %s16, 0
      %p57 = por %p55, %p56
      %p58 = scmp.ne.s32.totalorder %s50, %s52
      %p59 = scmp.eq.s32.totalorder %s21, 1
      %p60 = por %p58, %p59
      %p61 = scmp.ne.s32.totalorder %s52, %s53
      %p62 = scmp.eq.s32.totalorder %s21, 0
      %p63 = por %p61, %p62
      %p64 = scmp.ne.s32.totalorder %s52, %s53
      %p65 = scmp.eq.s32.totalorder %s22, 1
      %p66 = por %p64, %p65
      %p68 = scmp.ne.s32.totalorder %s53, %s67
      %p69 = scmp.eq.s32.totalorder %s22, 0
      %p70 = por %p68, %p69
      %s72 = sadd.s32 %s71, 1
      %p75 = scmp.eq.s32.totalorder %s16, 1
      %p76 = scmp.ne.s32.totalorder %s71, %s73
      %p77 = scmp.eq.s32.totalorder %s16, 0
      %p78 = por %p76, %p77
      %p79 = scmp.ne.s32.totalorder %s71, %s73
      %p80 = scmp.eq.s32.totalorder %s21, 1
      %p81 = por %p79, %p80
      %p82 = scmp.ne.s32.totalorder %s73, %s74
      %p83 = scmp.eq.s32.totalorder %s21, 0
      %p84 = por %p82, %p83
      %p85 = scmp.ne.s32.totalorder %s73, %s74
      %p86 = scmp.eq.s32.totalorder %s22, 1
      %p87 = por %p85, %p86
      %p89 = scmp.ne.s32.totalorder %s74, %s88
      %p90 = scmp.eq.s32.totalorder %s22, 0
      %p91 = por %p89, %p90
      %s93 = sadd.s32 %s92, 1
      %p96 = scmp.eq.s32.totalorder %s16, 1
      %p97 = scmp.ne.s32.totalorder %s92, %s94
      %p98 = scmp.eq.s32.totalorder %s16, 0
      %p99 = por %p97, %p98
      %p100 = scmp.ne.s32.totalorder %s92, %s94
      %p101 = scmp.eq.s32.totalorder %s21, 1
      %p102 = por %p100, %p101
      %p103 = scmp.ne.s32.totalorder %s94, %s95
      %p104 = scmp.eq.s32.totalorder %s21, 0
      %p105 = por %p103, %p104
      %p106 = scmp.ne.s32.totalorder %s94, %s95
      %p107 = scmp.eq.s32.totalorder %s22, 1
      %p108 = por %p106, %p107
      %p110 = scmp.ne.s32.totalorder %s95, %s109
      %p111 = scmp.eq.s32.totalorder %s22, 0
      %p112 = por %p110, %p111
      %s114 = sadd.s32 %s113, 1
      %p117 = scmp.eq.s32.totalorder %s16, 1
      %p118 = scmp.ne.s32.totalorder %s113, %s115
      %p119 = scmp.eq.s32.totalorder %s16, 0
      %p120 = por %p118, %p119
      %p121 = scmp.ne.s32.totalorder %s113, %s115
      %p122 = scmp.eq.s32.totalorder %s21, 1
      %p123 = por %p121, %p122
      %p124 = scmp.ne.s32.totalorder %s115, %s116
      %p125 = scmp.eq.s32.totalorder %s21, 0
      %p126 = por %p124, %p125
      %p127 = scmp.ne.s32.totalorder %s115, %s116
      %p128 = scmp.eq.s32.totalorder %s22, 1
      %p129 = por %p127, %p128
      %p131 = scmp.ne.s32.totalorder %s116, %s130
      %p132 = scmp.eq.s32.totalorder %s22, 0
      %p133 = por %p131, %p132
      %s135 = sadd.s32 %s134, 1
      %p138 = scmp.eq.s32.totalorder %s16, 1
      %p139 = scmp.ne.s32.totalorder %s134, %s136
      %p140 = scmp.eq.s32.totalorder %s16, 0
      %p141 = por %p139, %p140
      %p142 = scmp.ne.s32.totalorder %s134, %s136
      %p143 = scmp.eq.s32.totalorder %s21, 1
      %p144 = por %p142, %p143
      %p145 = scmp.ne.s32.totalorder %s136, %s137
      %p146 = scmp.eq.s32.totalorder %s21, 0
      %p147 = por %p145, %p146
      %p148 = scmp.ne.s32.totalorder %s136, %s137
      %p149 = scmp.eq.s32.totalorder %s22, 1
      %p150 = por %p148, %p149
      %p152 = scmp.ne.s32.totalorder %s137, %s151
      %p153 = scmp.eq.s32.totalorder %s22, 0
      %p154 = por %p152, %p153
      %s155 = ssub.s32 %s16, %s23
      %p156 = scmp.eq.s32.totalorder %s155, 0
      %s158 = sadd.s32 %s157, 1
      %s159 = scalar_select %p156, %s157, %s158
      %p162 = pneg %p156
      %p163 = scmp.eq.s32.totalorder %s16, 1
      %p164 = por %p162, %p163
      %p165 = scmp.ne.s32.totalorder %s157, %s160
      %p166 = scmp.eq.s32.totalorder %s16, 0
      %p167 = por %p165, %p166
      %p168 = scmp.ne.s32.totalorder %s157, %s160
      %p169 = scmp.eq.s32.totalorder %s21, 1
      %p170 = por %p168, %p169
      %p171 = scmp.ne.s32.totalorder %s160, %s161
      %p172 = scmp.eq.s32.totalorder %s21, 0
      %p173 = por %p171, %p172
      %p174 = scmp.ne.s32.totalorder %s160, %s161
      %p175 = scmp.eq.s32.totalorder %s22, 1
      %p176 = por %p174, %p175
      %p178 = scmp.ne.s32.totalorder %s161, %s177
      %p179 = scmp.eq.s32.totalorder %s22, 0
      %p180 = por %p178, %p179
      %p181 = scmp.le.s32.totalorder 1, %s16
      %p182 = scmp.lt.s32.totalorder %s16, 3
      %p183 = pnand %p181, %p182
      %p184 = pneg %p183
      // Predicated region
      $region9: #{tpu_custom_call.1} parent=5 // pred_check
        _
      $region10: #{tpu_custom_call.1} parent=5 // pred_check_branch
        %186 = sbr.rel (%p183) target = $region12
      $region11: #{tpu_custom_call.1} parent=5 // pred_region
        %s187 = ssub.s32 %s16, 1
        // Predicated region
        $region13: #{tpu_custom_call.1} parent=11 // pred_check
          %p188 = pneg %p63
        $region14: #{tpu_custom_call.1} parent=11 // pred_check_branch
          %190 = sbr.rel (%p188) target = $region16
        $region15: #{tpu_custom_call.1} parent=11 // pred_region
          _
        $region16: #{tpu_custom_call.1} parent=11 // pred_fallthru
          _
        // Predicated region
        $region17: #{tpu_custom_call.1} parent=11 // pred_check
          %p191 = pneg %p84
        $region18: #{tpu_custom_call.1} parent=11 // pred_check_branch
          %193 = sbr.rel (%p191) target = $region20
        $region19: #{tpu_custom_call.1} parent=11 // pred_region
          _
        $region20: #{tpu_custom_call.1} parent=11 // pred_fallthru
          _
        // Predicated region
        $region21: #{tpu_custom_call.1} parent=11 // pred_check
          %p194 = pneg %p105
        $region22: #{tpu_custom_call.1} parent=11 // pred_check_branch
          %196 = sbr.rel (%p194) target = $region24
        $region23: #{tpu_custom_call.1} parent=11 // pred_region
          %198 = vsyncadd [#allocation4], 0
          %s199 = sshll.u32 %s3, 4
          %s200 = int_to_ptr.hbm [resolvable:$true] %s199
          %s201 = sshll.u32 [#allocation3], 4
          %s202 = int_to_ptr.vmem [resolvable:$true] %s201
          %207 = dma.hbm_to_vmem [thread:$0]  %s200, 6144, %s202, [#allocation4], 128, 128, 8
        $region24: #{tpu_custom_call.1} parent=11 // pred_fallthru
          _
        // Predicated region
        $region25: #{tpu_custom_call.1} parent=11 // pred_check
          %p208 = pneg %p126
        $region26: #{tpu_custom_call.1} parent=11 // pred_check_branch
          %210 = sbr.rel (%p208) target = $region28
        $region27: #{tpu_custom_call.1} parent=11 // pred_region
          _
        $region28: #{tpu_custom_call.1} parent=11 // pred_fallthru
          _
        // Predicated region
        $region29: #{tpu_custom_call.1} parent=11 // pred_check
          %p211 = pneg %p147
        $region30: #{tpu_custom_call.1} parent=11 // pred_check_branch
          %213 = sbr.rel (%p211) target = $region32
        $region31: #{tpu_custom_call.1} parent=11 // pred_region
          _
        $region32: #{tpu_custom_call.1} parent=11 // pred_fallthru
          _
      $region12: #{tpu_custom_call.1} parent=5 // pred_fallthru
        _
      %p214 = scmp.lt.s32.totalorder %s16, 2
      // Predicated region
      $region33: #{tpu_custom_call.1} parent=5 // pred_check
        %p215 = pneg %p214
      $region34: #{tpu_custom_call.1} parent=5 // pred_check_branch
        %217 = sbr.rel (%p215) target = $region36
      $region35: #{tpu_custom_call.1} parent=5 // pred_region
        // Predicated region
        $region37: #{tpu_custom_call.1} parent=35 // pred_check
          %p218 = pneg %p36
        $region38: #{tpu_custom_call.1} parent=35 // pred_check_branch
          %220 = sbr.rel (%p218) target = $region40
        $region39: #{tpu_custom_call.1} parent=35 // pred_region
          %p221 = scmp.lt.s32.totalorder %s16, 1
          %s222 = scalar_select %p221, %s16, 1
          %s223 = smul.addr %s222, 2
          %s224 = smul.addr %s223, 4
          %s225 = scalar_lea.vmem %s0, %s224
        $region40: #{tpu_custom_call.1} parent=35 // pred_fallthru
          _
      $region36: #{tpu_custom_call.1} parent=5 // pred_fallthru
        _
      %p226 = scmp.le.s32.totalorder 1, %s16
      %p227 = scmp.lt.s32.totalorder %s16, 3
      %p228 = pnand %p226, %p227
      %p229 = pneg %p228
      // Predicated region
      $region41: #{tpu_custom_call.1} parent=5 // pred_check
        _
      $region42: #{tpu_custom_call.1} parent=5 // pred_check_branch
        %231 = sbr.rel (%p228) target = $region44
      $region43: #{tpu_custom_call.1} parent=5 // pred_region
        %s232 = ssub.s32 %s16, 1
        // Predicated region
        $region45: #{tpu_custom_call.1} parent=43 // pred_check
          %p233 = pneg %p105
        $region46: #{tpu_custom_call.1} parent=43 // pred_check_branch
          %235 = sbr.rel (%p233) target = $region48
        $region47: #{tpu_custom_call.1} parent=43 // pred_region
          %237 = dma.done [#allocation4], 6144
        $region48: #{tpu_custom_call.1} parent=43 // pred_fallthru
          _
        %p238 = scmp.lt.s32.totalorder %s21, 1
        %s239 = scalar_select %p238, %s21, 1
        %s240 = smul.addr %s239, 2
        %s241 = smul.addr %s240, 4
        %s242 = scalar_lea.vmem %s0, %s241
        %p243 = pneg %p42
        %p244 = pneg %p39
        %p245 = pneg %p63
        %p246 = pneg %p60
        %p247 = pneg %p84
        %p248 = pneg %p81
        %p249 = pneg %p105
        %p250 = pneg %p102
        %p251 = pneg %p126
        %p252 = pneg %p123
        %p253 = pneg %p147
        %p254 = pneg %p144
        %p255 = pneg %p173
        %p256 = pneg %p170
        %s257 = sand.u32 %s160, 1
        %s258 = scalar_lea.sflag [#allocation5], %s257
        %s259 = sand.u32 %s160, 1
        %s260 = smul.addr %s259, 16
        %s261 = scalar_lea.vmem [#allocation6], %s260
        %p262 = scmp.lt.s32.totalorder %s21, 1
        %s263 = scalar_select %p262, %s21, 1
        %s264 = smul.addr %s263, 2
        %s265 = smul.addr %s264, 4
        %s266 = scalar_lea.vmem %s0, %s265
        %v267 = vld [vmem:[%s266] sm:$0xff]
        %v268 = vld [vmem:[%s1] sm:$0xff]
        %v269 = vld [vmem:[%s1 + $0x8] sm:$0xff]
        %v270 = vld [vmem:[%s1 + $0x10] sm:$0xff]
        %v271 = vld [vmem:[%s1 + $0x18] sm:$0xff]
        %v272 = vld [vmem:[%s2] sm:$0xff]
        %v273 = vld [vmem:[%s2 + $0x8] sm:$0xff]
        %v274 = vld [vmem:[%s2 + $0x10] sm:$0xff]
        %v275 = vld [vmem:[%s2 + $0x18] sm:$0xff]
        %277 = vset.pattern.permute.xlu0 0
        %278 = vperm.xlu0 %277, %v272
        %v279 = vpop.permute.xlu0 %278
        %282 = vset.pattern.permute.xlu0 0
        %283 = vperm.xlu0 %282, %v273
        %v284 = vpop.permute.xlu0 %283
        %287 = vset.pattern.permute.xlu0 0
        %288 = vperm.xlu0 %287, %v274
        %v289 = vpop.permute.xlu0 %288
        %292 = vset.pattern.permute.xlu0 0
        %293 = vperm.xlu0 %292, %v275
        %v294 = vpop.permute.xlu0 %293
        %297 = vst [vmem:[#allocation1] ss:$2 sm:$0xff] %v267
        %v298 = vld.sshfl [vmem:[#allocation1] sm:$0xff pattern:$0x75316420]
        %v299 = vld.sshfl [vmem:[#allocation1 + $0x8] sm:$0xff pattern:$0x75316420]
        %vm300 = vcmask 31744
        %v302 = vsel %vm300, %v268, 0
        %v305 = vsel %vm300, %v269, 0
        %v308 = vsel %vm300, %v270, 0
        %v311 = vsel %vm300, %v271, 0
        %vm313 = vcmask 1043456
        %v314 = vsel %vm313, %v298, 0
        %v316 = vsel %vm313, %v299, 0
        %318 = vmatpush.msra.mxu0 0.0
        %319 = vmatpush.msra.mxu0 0.0
        %320 = vmatpush.msra.mxu0 0.0
        %321 = vmatpush.msra.mxu0 0.0
        %322 = vmatpush.msra.mxu0 0.0
        %323 = vmatpush.msra.mxu0 0.0
        %324 = vmatpush.msra.mxu0 0.0
        %325 = vmatpush.msra.mxu0 0.0
        %326 = vmatpush.msra.mxu0 0.0
        %327 = vmatpush.msra.mxu0 0.0
        %328 = vmatpush.msra.mxu0 0.0
        %329 = vmatpush.msra.mxu0 0.0
        %330 = vmatpush.msra.mxu0 0.0
        %331 = vmatpush.msra.mxu0 0.0
        %332 = vmatpush.msra.mxu0 0.0
        %333 = vmatpush.msra.mxu0 %v314
        %334 = vmatmul.f32.gmra.mxu0 %v302
        %v335 = vpop.f32.mrf.mxu0
        %v336 = vadd.f32 %v279, %v335
        %337 = vmatmul.f32.gmra.mxu0 %v305
        %v338 = vpop.f32.mrf.mxu0
        %v339 = vadd.f32 %v284, %v338
        %340 = vmatmul.f32.gmra.mxu0 %v308
        %v341 = vpop.f32.mrf.mxu0
        %v342 = vadd.f32 %v289, %v341
        %343 = vmatmul.f32.gmra.mxu0 %v311
        %v344 = vpop.f32.mrf.mxu0
        %v345 = vadd.f32 %v294, %v344
        %346 = vdwg.mxu0
        %347 = vmatpush.msra.mxu0 0.0
        %348 = vmatpush.msra.mxu0 0.0
        %349 = vmatpush.msra.mxu0 0.0
        %350 = vmatpush.msra.mxu0 0.0
        %351 = vmatpush.msra.mxu0 0.0
        %352 = vmatpush.msra.mxu0 0.0
        %353 = vmatpush.msra.mxu0 0.0
        %354 = vmatpush.msra.mxu0 0.0
        %355 = vmatpush.msra.mxu0 0.0
        %356 = vmatpush.msra.mxu0 0.0
        %357 = vmatpush.msra.mxu0 0.0
        %358 = vmatpush.msra.mxu0 0.0
        %359 = vmatpush.msra.mxu0 0.0
        %360 = vmatpush.msra.mxu0 0.0
        %361 = vmatpush.msra.mxu0 0.0
        %362 = vmatpush.msra.mxu0 %v316
        %363 = vmatmul.f32.gmra.mxu0 %v302
        %v364 = vpop.f32.mrf.mxu0
        %v365 = vadd.f32 %v279, %v364
        %366 = vmatmul.f32.gmra.mxu0 %v305
        %v367 = vpop.f32.mrf.mxu0
        %v368 = vadd.f32 %v284, %v367
        %369 = vmatmul.f32.gmra.mxu0 %v308
        %v370 = vpop.f32.mrf.mxu0
        %v371 = vadd.f32 %v289, %v370
        %372 = vmatmul.f32.gmra.mxu0 %v311
        %v373 = vpop.f32.mrf.mxu0
        %v374 = vadd.f32 %v294, %v373
        %375 = vdwg.mxu0
        %v376 = vmax.f32 %v336, 0.0
        %v377 = vmax.f32 %v365, 0.0
        %v378 = vmax.f32 %v339, 0.0
        %v379 = vmax.f32 %v368, 0.0
        %v380 = vmax.f32 %v342, 0.0
        %v381 = vmax.f32 %v371, 0.0
        %v382 = vmax.f32 %v345, 0.0
        %v383 = vmax.f32 %v374, 0.0
        %384 = vrot.lane.b32.xlu0 %v376, 17
        %v385 = vpop.permute.xlu0 %384
        %386 = vrot.lane.b32.xlu0 %v378, 17
        %v387 = vpop.permute.xlu0 %386
        %388 = vrot.lane.b32.xlu0 %v380, 17
        %v389 = vpop.permute.xlu0 %388
        %390 = vrot.lane.b32.xlu0 %v382, 17
        %v391 = vpop.permute.xlu0 %390
        %392 = vrot.lane.b32.xlu0 %v377, 17
        %v393 = vpop.permute.xlu0 %392
        %394 = vrot.lane.b32.xlu0 %v379, 17
        %v395 = vpop.permute.xlu0 %394
        %396 = vrot.lane.b32.xlu0 %v381, 17
        %v397 = vpop.permute.xlu0 %396
        %398 = vrot.lane.b32.xlu0 %v383, 17
        %v399 = vpop.permute.xlu0 %398
        %v400 = vlaneseq
        %v401 = vand.u32 %v400, 127
        %vm402 = vcmp.lt.s32.totalorder %v401, 17
        %v403 = vsel %vm402, %v385, %v393
        %v404 = vsel %vm402, %v387, %v395
        %v405 = vsel %vm402, %v389, %v397
        %v406 = vsel %vm402, %v391, %v399
        %v407 = vsel %vm402, %v393, %v385
        %v408 = vsel %vm402, %v395, %v387
        %v409 = vsel %vm402, %v397, %v389
        %v410 = vsel %vm402, %v399, %v391
        %v411 = vld [vmem:[%s5] ss:$8 sm:$0x3]
        %v413 = vperm.slane %v411, 0
        %v414 = vperm.slane %v411, 1
        %v417 = vmul.f32 %v407, %v413
        %v418 = vmul.f32 %v403, %v414
        %v419 = vmul.f32 %v408, %v413
        %v420 = vmul.f32 %v404, %v414
        %v421 = vmul.f32 %v409, %v413
        %v422 = vmul.f32 %v405, %v414
        %v423 = vmul.f32 %v410, %v413
        %v424 = vmul.f32 %v406, %v414
        %425 = vrot.lane.b32.xlu0 %v376, 16
        %v426 = vpop.permute.xlu0 %425
        %427 = vrot.lane.b32.xlu0 %v378, 16
        %v428 = vpop.permute.xlu0 %427
        %429 = vrot.lane.b32.xlu0 %v380, 16
        %v430 = vpop.permute.xlu0 %429
        %431 = vrot.lane.b32.xlu0 %v382, 16
        %v432 = vpop.permute.xlu0 %431
        %433 = vrot.lane.b32.xlu0 %v377, 16
        %v434 = vpop.permute.xlu0 %433
        %435 = vrot.lane.b32.xlu0 %v379, 16
        %v436 = vpop.permute.xlu0 %435
        %437 = vrot.lane.b32.xlu0 %v381, 16
        %v438 = vpop.permute.xlu0 %437
        %439 = vrot.lane.b32.xlu0 %v383, 16
        %v440 = vpop.permute.xlu0 %439
        %vm441 = vcmp.lt.s32.totalorder %v401, 16
        %v442 = vsel %vm441, %v426, %v434
        %v443 = vsel %vm441, %v428, %v436
        %v444 = vsel %vm441, %v430, %v438
        %v445 = vsel %vm441, %v432, %v440
        %v446 = vsel %vm441, %v434, %v426
        %v447 = vsel %vm441, %v436, %v428
        %v448 = vsel %vm441, %v438, %v430
        %v449 = vsel %vm441, %v440, %v432
        %s450 = scalar_lea.vmem %s5, 1
        %v451 = vld [vmem:[%s450] ss:$8 sm:$0x3]
        %v453 = vperm.slane %v451, 0
        %v454 = vperm.slane %v451, 1
        %v457 = vmul.f32 %v446, %v453
        %v458 = vmul.f32 %v442, %v454
        %v459 = vmul.f32 %v447, %v453
        %v460 = vmul.f32 %v443, %v454
        %v461 = vmul.f32 %v448, %v453
        %v462 = vmul.f32 %v444, %v454
        %v463 = vmul.f32 %v449, %v453
        %v464 = vmul.f32 %v445, %v454
        %465 = vrot.lane.b32.xlu0 %v376, 15
        %v466 = vpop.permute.xlu0 %465
        %467 = vrot.lane.b32.xlu0 %v378, 15
        %v468 = vpop.permute.xlu0 %467
        %469 = vrot.lane.b32.xlu0 %v380, 15
        %v470 = vpop.permute.xlu0 %469
        %471 = vrot.lane.b32.xlu0 %v382, 15
        %v472 = vpop.permute.xlu0 %471
        %473 = vrot.lane.b32.xlu0 %v377, 15
        %v474 = vpop.permute.xlu0 %473
        %475 = vrot.lane.b32.xlu0 %v379, 15
        %v476 = vpop.permute.xlu0 %475
        %477 = vrot.lane.b32.xlu0 %v381, 15
        %v478 = vpop.permute.xlu0 %477
        %479 = vrot.lane.b32.xlu0 %v383, 15
        %v480 = vpop.permute.xlu0 %479
        %vm481 = vcmp.lt.s32.totalorder %v401, 15
        %v482 = vsel %vm481, %v466, %v474
        %v483 = vsel %vm481, %v468, %v476
        %v484 = vsel %vm481, %v470, %v478
        %v485 = vsel %vm481, %v472, %v480
        %v486 = vsel %vm481, %v474, %v466
        %v487 = vsel %vm481, %v476, %v468
        %v488 = vsel %vm481, %v478, %v470
        %v489 = vsel %vm481, %v480, %v472
        %s490 = scalar_lea.vmem %s5, 2
        %v491 = vld [vmem:[%s490] ss:$8 sm:$0x3]
        %v493 = vperm.slane %v491, 0
        %v494 = vperm.slane %v491, 1
        %v497 = vmul.f32 %v486, %v493
        %v498 = vmul.f32 %v482, %v494
        %v499 = vmul.f32 %v487, %v493
        %v500 = vmul.f32 %v483, %v494
        %v501 = vmul.f32 %v488, %v493
        %v502 = vmul.f32 %v484, %v494
        %v503 = vmul.f32 %v489, %v493
        %v504 = vmul.f32 %v485, %v494
        %505 = vxpose.xlu0.b32.start [1/16] %v417, 128
        %506 = vxpose.xlu0.b32.cont [2/16] %v419, 128
        %507 = vxpose.xlu0.b32.cont [3/16] %v421, 128
        %508 = vxpose.xlu0.b32.cont [4/16] %v423, 128
        %509 = vxpose.xlu0.b32.cont [5/16] %v457, 128
        %510 = vxpose.xlu0.b32.cont [6/16] %v459, 128
        %511 = vxpose.xlu0.b32.cont [7/16] %v461, 128
        %512 = vxpose.xlu0.b32.cont [8/16] %v463, 128
        %513 = vxpose.xlu0.b32.cont [9/16] %v497, 128
        %514 = vxpose.xlu0.b32.cont [10/16] %v499, 128
        %515 = vxpose.xlu0.b32.cont [11/16] %v501, 128
        %516 = vxpose.xlu0.b32.cont [12/16] %v503, 128
        %517 = vxpose.xlu0.b32.cont [13/16] 0.0, 128
        %518 = vxpose.xlu0.b32.cont [14/16] 0.0, 128
        %519 = vxpose.xlu0.b32.cont [15/16] 0.0, 128
        %520 = vxpose.xlu0.b32.end [16/16] 0.0, 128
        %v521 = vpop.trf.xlu0
        %v522 = vpop.trf.xlu0
        %v523 = vpop.trf.xlu0
        %v524 = vpop.trf.xlu0
        %v525 = vpop.trf.xlu0
        %v526 = vpop.trf.xlu0
        %v527 = vpop.trf.xlu0
        %v528 = vpop.trf.xlu0
        %v529 = vpop.trf.xlu0
        %v530 = vpop.trf.xlu0
        %v531 = vpop.trf.xlu0
        %v532 = vpop.trf.xlu0
        %v533 = vpop.trf.xlu0
        %v534 = vpop.trf.xlu0
        %v535 = vpop.trf.xlu0
        %v536 = vpop.trf.xlu0
        %537 = vxpose.xlu0.b32.start [1/16] %v418, 128
        %538 = vxpose.xlu0.b32.cont [2/16] %v420, 128
        %539 = vxpose.xlu0.b32.cont [3/16] %v422, 128
        %540 = vxpose.xlu0.b32.cont [4/16] %v424, 128
        %541 = vxpose.xlu0.b32.cont [5/16] %v458, 128
        %542 = vxpose.xlu0.b32.cont [6/16] %v460, 128
        %543 = vxpose.xlu0.b32.cont [7/16] %v462, 128
        %544 = vxpose.xlu0.b32.cont [8/16] %v464, 128
        %545 = vxpose.xlu0.b32.cont [9/16] %v498, 128
        %546 = vxpose.xlu0.b32.cont [10/16] %v500, 128
        %547 = vxpose.xlu0.b32.cont [11/16] %v502, 128
        %548 = vxpose.xlu0.b32.cont [12/16] %v504, 128
        %549 = vxpose.xlu0.b32.cont [13/16] 0.0, 128
        %550 = vxpose.xlu0.b32.cont [14/16] 0.0, 128
        %551 = vxpose.xlu0.b32.cont [15/16] 0.0, 128
        %552 = vxpose.xlu0.b32.end [16/16] 0.0, 128
        %v553 = vpop.trf.xlu0
        %v554 = vpop.trf.xlu0
        %v555 = vpop.trf.xlu0
        %v556 = vpop.trf.xlu0
        %v557 = vpop.trf.xlu0
        %v558 = vpop.trf.xlu0
        %v559 = vpop.trf.xlu0
        %v560 = vpop.trf.xlu0
        %v561 = vpop.trf.xlu0
        %v562 = vpop.trf.xlu0
        %v563 = vpop.trf.xlu0
        %v564 = vpop.trf.xlu0
        %v565 = vpop.trf.xlu0
        %v566 = vpop.trf.xlu0
        %v567 = vpop.trf.xlu0
        %v568 = vpop.trf.xlu0
        %569 = vst [vmem:[#allocation2] sm:$0xff] %v521
        %570 = vst [vmem:[#allocation2 + $0x18] sm:$0xff] %v522
        %571 = vst [vmem:[#allocation2 + $0x30] sm:$0xff] %v523
        %572 = vst [vmem:[#allocation2 + $0x48] sm:$0xff] %v524
        %573 = vst [vmem:[#allocation2 + $0x60] sm:$0xff] %v525
        %574 = vst [vmem:[#allocation2 + $0x78] sm:$0xff] %v526
        %575 = vst [vmem:[#allocation2 + $0x90] sm:$0xff] %v527
        %576 = vst [vmem:[#allocation2 + $0xa8] sm:$0xff] %v528
        %577 = vst [vmem:[#allocation2 + $0xc0] sm:$0xff] %v529
        %578 = vst [vmem:[#allocation2 + $0xd8] sm:$0xff] %v530
        %579 = vst [vmem:[#allocation2 + $0xf0] sm:$0xff] %v531
        %580 = vst [vmem:[#allocation2 + $0x108] sm:$0xff] %v532
        %581 = vst [vmem:[#allocation2 + $0x120] sm:$0xff] %v533
        %582 = vst [vmem:[#allocation2 + $0x138] sm:$0xff] %v534
        %583 = vst [vmem:[#allocation2 + $0x150] sm:$0xff] %v535
        %584 = vst [vmem:[#allocation2 + $0x168] sm:$0xff] %v536
        %585 = vst [vmem:[#allocation2 + $0x180] sm:$0xff] %v553
        %586 = vst [vmem:[#allocation2 + $0x198] sm:$0xff] %v554
        %587 = vst [vmem:[#allocation2 + $0x1b0] sm:$0xff] %v555
        %588 = vst [vmem:[#allocation2 + $0x1c8] sm:$0xff] %v556
        %589 = vst [vmem:[#allocation2 + $0x1e0] sm:$0xff] %v557
        %590 = vst [vmem:[#allocation2 + $0x1f8] sm:$0xff] %v558
        %591 = vst [vmem:[#allocation2 + $0x210] sm:$0xff] %v559
        %592 = vst [vmem:[#allocation2 + $0x228] sm:$0xff] %v560
        %593 = vst [vmem:[#allocation2 + $0x240] sm:$0xff] %v561
        %594 = vst [vmem:[#allocation2 + $0x258] sm:$0xff] %v562
        %595 = vst [vmem:[#allocation2 + $0x270] sm:$0xff] %v563
        %596 = vst [vmem:[#allocation2 + $0x288] sm:$0xff] %v564
        %597 = vst [vmem:[#allocation2 + $0x2a0] sm:$0xff] %v565
        %598 = vst [vmem:[#allocation2 + $0x2b8] sm:$0xff] %v566
        %599 = vst [vmem:[#allocation2 + $0x2d0] sm:$0xff] %v567
        %600 = vst [vmem:[#allocation2 + $0x2e8] sm:$0xff] %v568
        %601 = vrot.lane.b32.xlu0 %v376, 1
        %v602 = vpop.permute.xlu0 %601
        %603 = vrot.lane.b32.xlu0 %v378, 1
        %v604 = vpop.permute.xlu0 %603
        %605 = vrot.lane.b32.xlu0 %v380, 1
        %v606 = vpop.permute.xlu0 %605
        %607 = vrot.lane.b32.xlu0 %v382, 1
        %v608 = vpop.permute.xlu0 %607
        %609 = vrot.lane.b32.xlu0 %v377, 1
        %v610 = vpop.permute.xlu0 %609
        %611 = vrot.lane.b32.xlu0 %v379, 1
        %v612 = vpop.permute.xlu0 %611
        %613 = vrot.lane.b32.xlu0 %v381, 1
        %v614 = vpop.permute.xlu0 %613
        %615 = vrot.lane.b32.xlu0 %v383, 1
        %v616 = vpop.permute.xlu0 %615
        %vm617 = vcmp.lt.s32.totalorder %v401, 1
        %v618 = vsel %vm617, %v602, %v610
        %v619 = vsel %vm617, %v604, %v612
        %v620 = vsel %vm617, %v606, %v614
        %v621 = vsel %vm617, %v608, %v616
        %v622 = vsel %vm617, %v610, %v602
        %v623 = vsel %vm617, %v612, %v604
        %v624 = vsel %vm617, %v614, %v606
        %v625 = vsel %vm617, %v616, %v608
        %s626 = scalar_lea.vmem %s5, 3
        %v627 = vld [vmem:[%s626] ss:$8 sm:$0x3]
        %v629 = vperm.slane %v627, 0
        %v630 = vperm.slane %v627, 1
        %v633 = vmul.f32 %v622, %v629
        %v634 = vmul.f32 %v618, %v630
        %v635 = vmul.f32 %v623, %v629
        %v636 = vmul.f32 %v619, %v630
        %v637 = vmul.f32 %v624, %v629
        %v638 = vmul.f32 %v620, %v630
        %v639 = vmul.f32 %v625, %v629
        %v640 = vmul.f32 %v621, %v630
        %641 = vrot.lane.b32.xlu0 %v376, 127
        %v642 = vpop.permute.xlu0 %641
        %643 = vrot.lane.b32.xlu0 %v378, 127
        %v644 = vpop.permute.xlu0 %643
        %645 = vrot.lane.b32.xlu0 %v380, 127
        %v646 = vpop.permute.xlu0 %645
        %647 = vrot.lane.b32.xlu0 %v382, 127
        %v648 = vpop.permute.xlu0 %647
        %649 = vrot.lane.b32.xlu0 %v377, 127
        %v650 = vpop.permute.xlu0 %649
        %651 = vrot.lane.b32.xlu0 %v379, 127
        %v652 = vpop.permute.xlu0 %651
        %653 = vrot.lane.b32.xlu0 %v381, 127
        %v654 = vpop.permute.xlu0 %653
        %655 = vrot.lane.b32.xlu0 %v383, 127
        %v656 = vpop.permute.xlu0 %655
        %vm657 = vcmp.lt.s32.totalorder %v401, 127
        %v658 = vsel %vm657, %v642, %v650
        %v659 = vsel %vm657, %v644, %v652
        %v660 = vsel %vm657, %v646, %v654
        %v661 = vsel %vm657, %v648, %v656
        %v662 = vsel %vm657, %v650, %v642
        %v663 = vsel %vm657, %v652, %v644
        %v664 = vsel %vm657, %v654, %v646
        %v665 = vsel %vm657, %v656, %v648
        %s666 = scalar_lea.vmem %s5, 5
        %v667 = vld [vmem:[%s666] ss:$8 sm:$0x3]
        %v669 = vperm.slane %v667, 0
        %v670 = vperm.slane %v667, 1
        %v673 = vmul.f32 %v658, %v669
        %v674 = vmul.f32 %v662, %v670
        %v675 = vmul.f32 %v659, %v669
        %v676 = vmul.f32 %v663, %v670
        %v677 = vmul.f32 %v660, %v669
        %v678 = vmul.f32 %v664, %v670
        %v679 = vmul.f32 %v661, %v669
        %v680 = vmul.f32 %v665, %v670
        %681 = vxpose.xlu0.b32.start [1/16] %v633, 128
        %682 = vxpose.xlu0.b32.cont [2/16] %v635, 128
        %683 = vxpose.xlu0.b32.cont [3/16] %v637, 128
        %684 = vxpose.xlu0.b32.cont [4/16] %v639, 128
        %685 = vxpose.xlu0.b32.cont [5/16] %v376, 128
        %686 = vxpose.xlu0.b32.cont [6/16] %v378, 128
        %687 = vxpose.xlu0.b32.cont [7/16] %v380, 128
        %688 = vxpose.xlu0.b32.cont [8/16] %v382, 128
        %689 = vxpose.xlu0.b32.cont [9/16] %v673, 128
        %690 = vxpose.xlu0.b32.cont [10/16] %v675, 128
        %691 = vxpose.xlu0.b32.cont [11/16] %v677, 128
        %692 = vxpose.xlu0.b32.cont [12/16] %v679, 128
        %693 = vxpose.xlu0.b32.cont [13/16] 0.0, 128
        %694 = vxpose.xlu0.b32.cont [14/16] 0.0, 128
        %695 = vxpose.xlu0.b32.cont [15/16] 0.0, 128
        %696 = vxpose.xlu0.b32.end [16/16] 0.0, 128
        %v697 = vpop.trf.xlu0
        %v698 = vpop.trf.xlu0
        %v699 = vpop.trf.xlu0
        %v700 = vpop.trf.xlu0
        %v701 = vpop.trf.xlu0
        %v702 = vpop.trf.xlu0
        %v703 = vpop.trf.xlu0
        %v704 = vpop.trf.xlu0
        %v705 = vpop.trf.xlu0
        %v706 = vpop.trf.xlu0
        %v707 = vpop.trf.xlu0
        %v708 = vpop.trf.xlu0
        %v709 = vpop.trf.xlu0
        %v710 = vpop.trf.xlu0
        %v711 = vpop.trf.xlu0
        %v712 = vpop.trf.xlu0
        %713 = vxpose.xlu0.b32.start [1/16] %v634, 128
        %714 = vxpose.xlu0.b32.cont [2/16] %v636, 128
        %715 = vxpose.xlu0.b32.cont [3/16] %v638, 128
        %716 = vxpose.xlu0.b32.cont [4/16] %v640, 128
        %717 = vxpose.xlu0.b32.cont [5/16] %v377, 128
        %718 = vxpose.xlu0.b32.cont [6/16] %v379, 128
        %719 = vxpose.xlu0.b32.cont [7/16] %v381, 128
        %720 = vxpose.xlu0.b32.cont [8/16] %v383, 128
        %721 = vxpose.xlu0.b32.cont [9/16] %v674, 128
        %722 = vxpose.xlu0.b32.cont [10/16] %v676, 128
        %723 = vxpose.xlu0.b32.cont [11/16] %v678, 128
        %724 = vxpose.xlu0.b32.cont [12/16] %v680, 128
        %725 = vxpose.xlu0.b32.cont [13/16] 0.0, 128
        %726 = vxpose.xlu0.b32.cont [14/16] 0.0, 128
        %727 = vxpose.xlu0.b32.cont [15/16] 0.0, 128
        %728 = vxpose.xlu0.b32.end [16/16] 0.0, 128
        %v729 = vpop.trf.xlu0
        %v730 = vpop.trf.xlu0
        %v731 = vpop.trf.xlu0
        %v732 = vpop.trf.xlu0
        %v733 = vpop.trf.xlu0
        %v734 = vpop.trf.xlu0
        %v735 = vpop.trf.xlu0
        %v736 = vpop.trf.xlu0
        %v737 = vpop.trf.xlu0
        %v738 = vpop.trf.xlu0
        %v739 = vpop.trf.xlu0
        %v740 = vpop.trf.xlu0
        %v741 = vpop.trf.xlu0
        %v742 = vpop.trf.xlu0
        %v743 = vpop.trf.xlu0
        %v744 = vpop.trf.xlu0
        %745 = vst [vmem:[#allocation2 + $0x8] sm:$0xff] %v697
        %746 = vst [vmem:[#allocation2 + $0x20] sm:$0xff] %v698
        %747 = vst [vmem:[#allocation2 + $0x38] sm:$0xff] %v699
        %748 = vst [vmem:[#allocation2 + $0x50] sm:$0xff] %v700
        %749 = vst [vmem:[#allocation2 + $0x68] sm:$0xff] %v701
        %750 = vst [vmem:[#allocation2 + $0x80] sm:$0xff] %v702
        %751 = vst [vmem:[#allocation2 + $0x98] sm:$0xff] %v703
        %752 = vst [vmem:[#allocation2 + $0xb0] sm:$0xff] %v704
        %753 = vst [vmem:[#allocation2 + $0xc8] sm:$0xff] %v705
        %754 = vst [vmem:[#allocation2 + $0xe0] sm:$0xff] %v706
        %755 = vst [vmem:[#allocation2 + $0xf8] sm:$0xff] %v707
        %756 = vst [vmem:[#allocation2 + $0x110] sm:$0xff] %v708
        %757 = vst [vmem:[#allocation2 + $0x128] sm:$0xff] %v709
        %758 = vst [vmem:[#allocation2 + $0x140] sm:$0xff] %v710
        %759 = vst [vmem:[#allocation2 + $0x158] sm:$0xff] %v711
        %760 = vst [vmem:[#allocation2 + $0x170] sm:$0xff] %v712
        %761 = vst [vmem:[#allocation2 + $0x188] sm:$0xff] %v729
        %762 = vst [vmem:[#allocation2 + $0x1a0] sm:$0xff] %v730
        %763 = vst [vmem:[#allocation2 + $0x1b8] sm:$0xff] %v731
        %764 = vst [vmem:[#allocation2 + $0x1d0] sm:$0xff] %v732
        %765 = vst [vmem:[#allocation2 + $0x1e8] sm:$0xff] %v733
        %766 = vst [vmem:[#allocation2 + $0x200] sm:$0xff] %v734
        %767 = vst [vmem:[#allocation2 + $0x218] sm:$0xff] %v735
        %768 = vst [vmem:[#allocation2 + $0x230] sm:$0xff] %v736
        %769 = vst [vmem:[#allocation2 + $0x248] sm:$0xff] %v737
        %770 = vst [vmem:[#allocation2 + $0x260] sm:$0xff] %v738
        %771 = vst [vmem:[#allocation2 + $0x278] sm:$0xff] %v739
        %772 = vst [vmem:[#allocation2 + $0x290] sm:$0xff] %v740
        %773 = vst [vmem:[#allocation2 + $0x2a8] sm:$0xff] %v741
        %774 = vst [vmem:[#allocation2 + $0x2c0] sm:$0xff] %v742
        %775 = vst [vmem:[#allocation2 + $0x2d8] sm:$0xff] %v743
        %776 = vst [vmem:[#allocation2 + $0x2f0] sm:$0xff] %v744
        %777 = vrot.lane.b32.xlu0 %v376, 113
        %v778 = vpop.permute.xlu0 %777
        %779 = vrot.lane.b32.xlu0 %v378, 113
        %v780 = vpop.permute.xlu0 %779
        %781 = vrot.lane.b32.xlu0 %v380, 113
        %v782 = vpop.permute.xlu0 %781
        %783 = vrot.lane.b32.xlu0 %v382, 113
        %v784 = vpop.permute.xlu0 %783
        %785 = vrot.lane.b32.xlu0 %v377, 113
        %v786 = vpop.permute.xlu0 %785
        %787 = vrot.lane.b32.xlu0 %v379, 113
        %v788 = vpop.permute.xlu0 %787
        %789 = vrot.lane.b32.xlu0 %v381, 113
        %v790 = vpop.permute.xlu0 %789
        %791 = vrot.lane.b32.xlu0 %v383, 113
        %v792 = vpop.permute.xlu0 %791
        %vm793 = vcmp.lt.s32.totalorder %v401, 113
        %v794 = vsel %vm793, %v778, %v786
        %v795 = vsel %vm793, %v780, %v788
        %v796 = vsel %vm793, %v782, %v790
        %v797 = vsel %vm793, %v784, %v792
        %v798 = vsel %vm793, %v786, %v778
        %v799 = vsel %vm793, %v788, %v780
        %v800 = vsel %vm793, %v790, %v782
        %v801 = vsel %vm793, %v792, %v784
        %s802 = scalar_lea.vmem %s5, 6
        %v803 = vld [vmem:[%s802] ss:$8 sm:$0x3]
        %v805 = vperm.slane %v803, 0
        %v806 = vperm.slane %v803, 1
        %v809 = vmul.f32 %v794, %v805
        %v810 = vmul.f32 %v798, %v806
        %v811 = vmul.f32 %v795, %v805
        %v812 = vmul.f32 %v799, %v806
        %v813 = vmul.f32 %v796, %v805
        %v814 = vmul.f32 %v800, %v806
        %v815 = vmul.f32 %v797, %v805
        %v816 = vmul.f32 %v801, %v806
        %817 = vrot.lane.b32.xlu0 %v376, 112
        %v818 = vpop.permute.xlu0 %817
        %819 = vrot.lane.b32.xlu0 %v378, 112
        %v820 = vpop.permute.xlu0 %819
        %821 = vrot.lane.b32.xlu0 %v380, 112
        %v822 = vpop.permute.xlu0 %821
        %823 = vrot.lane.b32.xlu0 %v382, 112
        %v824 = vpop.permute.xlu0 %823
        %825 = vrot.lane.b32.xlu0 %v377, 112
        %v826 = vpop.permute.xlu0 %825
        %827 = vrot.lane.b32.xlu0 %v379, 112
        %v828 = vpop.permute.xlu0 %827
        %829 = vrot.lane.b32.xlu0 %v381, 112
        %v830 = vpop.permute.xlu0 %829
        %831 = vrot.lane.b32.xlu0 %v383, 112
        %v832 = vpop.permute.xlu0 %831
        %vm833 = vcmp.lt.s32.totalorder %v401, 112
        %v834 = vsel %vm833, %v818, %v826
        %v835 = vsel %vm833, %v820, %v828
        %v836 = vsel %vm833, %v822, %v830
        %v837 = vsel %vm833, %v824, %v832
        %v838 = vsel %vm833, %v826, %v818
        %v839 = vsel %vm833, %v828, %v820
        %v840 = vsel %vm833, %v830, %v822
        %v841 = vsel %vm833, %v832, %v824
        %s842 = scalar_lea.vmem %s5, 7
        %v843 = vld [vmem:[%s842] ss:$8 sm:$0x3]
        %v845 = vperm.slane %v843, 0
        %v846 = vperm.slane %v843, 1
        %v849 = vmul.f32 %v834, %v845
        %v850 = vmul.f32 %v838, %v846
        %v851 = vmul.f32 %v835, %v845
        %v852 = vmul.f32 %v839, %v846
        %v853 = vmul.f32 %v836, %v845
        %v854 = vmul.f32 %v840, %v846
        %v855 = vmul.f32 %v837, %v845
        %v856 = vmul.f32 %v841, %v846
        %857 = vrot.lane.b32.xlu0 %v376, 111
        %v858 = vpop.permute.xlu0 %857
        %859 = vrot.lane.b32.xlu0 %v378, 111
        %v860 = vpop.permute.xlu0 %859
        %861 = vrot.lane.b32.xlu0 %v380, 111
        %v862 = vpop.permute.xlu0 %861
        %863 = vrot.lane.b32.xlu0 %v382, 111
        %v864 = vpop.permute.xlu0 %863
        %865 = vrot.lane.b32.xlu0 %v377, 111
        %v866 = vpop.permute.xlu0 %865
        %867 = vrot.lane.b32.xlu0 %v379, 111
        %v868 = vpop.permute.xlu0 %867
        %869 = vrot.lane.b32.xlu0 %v381, 111
        %v870 = vpop.permute.xlu0 %869
        %871 = vrot.lane.b32.xlu0 %v383, 111
        %v872 = vpop.permute.xlu0 %871
        %vm873 = vcmp.lt.s32.totalorder %v401, 111
        %v874 = vsel %vm873, %v858, %v866
        %v875 = vsel %vm873, %v860, %v868
        %v876 = vsel %vm873, %v862, %v870
        %v877 = vsel %vm873, %v864, %v872
        %v878 = vsel %vm873, %v866, %v858
        %v879 = vsel %vm873, %v868, %v860
        %v880 = vsel %vm873, %v870, %v862
        %v881 = vsel %vm873, %v872, %v864
        %s882 = scalar_lea.vmem %s5, 16
        %v883 = vld [vmem:[%s882] ss:$8 sm:$0x3]
        %v885 = vperm.slane %v883, 0
        %v886 = vperm.slane %v883, 1
        %v889 = vmul.f32 %v874, %v885
        %v890 = vmul.f32 %v878, %v886
        %v891 = vmul.f32 %v875, %v885
        %v892 = vmul.f32 %v879, %v886
        %v893 = vmul.f32 %v876, %v885
        %v894 = vmul.f32 %v880, %v886
        %v895 = vmul.f32 %v877, %v885
        %v896 = vmul.f32 %v881, %v886
        %897 = vxpose.xlu0.b32.start [1/16] %v809, 128
        %898 = vxpose.xlu0.b32.cont [2/16] %v811, 128
        %899 = vxpose.xlu0.b32.cont [3/16] %v813, 128
        %900 = vxpose.xlu0.b32.cont [4/16] %v815, 128
        %901 = vxpose.xlu0.b32.cont [5/16] %v849, 128
        %902 = vxpose.xlu0.b32.cont [6/16] %v851, 128
        %903 = vxpose.xlu0.b32.cont [7/16] %v853, 128
        %904 = vxpose.xlu0.b32.cont [8/16] %v855, 128
        %905 = vxpose.xlu0.b32.cont [9/16] %v889, 128
        %906 = vxpose.xlu0.b32.cont [10/16] %v891, 128
        %907 = vxpose.xlu0.b32.cont [11/16] %v893, 128
        %908 = vxpose.xlu0.b32.cont [12/16] %v895, 128
        %909 = vxpose.xlu0.b32.cont [13/16] 0.0, 128
        %910 = vxpose.xlu0.b32.cont [14/16] 0.0, 128
        %911 = vxpose.xlu0.b32.cont [15/16] 0.0, 128
        %912 = vxpose.xlu0.b32.end [16/16] 0.0, 128
        %v913 = vpop.trf.xlu0
        %v914 = vpop.trf.xlu0
        %v915 = vpop.trf.xlu0
        %v916 = vpop.trf.xlu0
        %v917 = vpop.trf.xlu0
        %v918 = vpop.trf.xlu0
        %v919 = vpop.trf.xlu0
        %v920 = vpop.trf.xlu0
        %v921 = vpop.trf.xlu0
        %v922 = vpop.trf.xlu0
        %v923 = vpop.trf.xlu0
        %v924 = vpop.trf.xlu0
        %v925 = vpop.trf.xlu0
        %v926 = vpop.trf.xlu0
        %v927 = vpop.trf.xlu0
        %v928 = vpop.trf.xlu0
        %929 = vxpose.xlu0.b32.start [1/16] %v810, 128
        %930 = vxpose.xlu0.b32.cont [2/16] %v812, 128
        %931 = vxpose.xlu0.b32.cont [3/16] %v814, 128
        %932 = vxpose.xlu0.b32.cont [4/16] %v816, 128
        %933 = vxpose.xlu0.b32.cont [5/16] %v850, 128
        %934 = vxpose.xlu0.b32.cont [6/16] %v852, 128
        %935 = vxpose.xlu0.b32.cont [7/16] %v854, 128
        %936 = vxpose.xlu0.b32.cont [8/16] %v856, 128
        %937 = vxpose.xlu0.b32.cont [9/16] %v890, 128
        %938 = vxpose.xlu0.b32.cont [10/16] %v892, 128
        %939 = vxpose.xlu0.b32.cont [11/16] %v894, 128
        %940 = vxpose.xlu0.b32.cont [12/16] %v896, 128
        %941 = vxpose.xlu0.b32.cont [13/16] 0.0, 128
        %942 = vxpose.xlu0.b32.cont [14/16] 0.0, 128
        %943 = vxpose.xlu0.b32.cont [15/16] 0.0, 128
        %944 = vxpose.xlu0.b32.end [16/16] 0.0, 128
        %v945 = vpop.trf.xlu0
        %v946 = vpop.trf.xlu0
        %v947 = vpop.trf.xlu0
        %v948 = vpop.trf.xlu0
        %v949 = vpop.trf.xlu0
        %v950 = vpop.trf.xlu0
        %v951 = vpop.trf.xlu0
        %v952 = vpop.trf.xlu0
        %v953 = vpop.trf.xlu0
        %v954 = vpop.trf.xlu0
        %v955 = vpop.trf.xlu0
        %v956 = vpop.trf.xlu0
        %v957 = vpop.trf.xlu0
        %v958 = vpop.trf.xlu0
        %v959 = vpop.trf.xlu0
        %v960 = vpop.trf.xlu0
        %961 = vst [vmem:[#allocation2 + $0x10] sm:$0xff] %v913
        %962 = vst [vmem:[#allocation2 + $0x28] sm:$0xff] %v914
        %963 = vst [vmem:[#allocation2 + $0x40] sm:$0xff] %v915
        %964 = vst [vmem:[#allocation2 + $0x58] sm:$0xff] %v916
        %965 = vst [vmem:[#allocation2 + $0x70] sm:$0xff] %v917
        %966 = vst [vmem:[#allocation2 + $0x88] sm:$0xff] %v918
        %967 = vst [vmem:[#allocation2 + $0xa0] sm:$0xff] %v919
        %968 = vst [vmem:[#allocation2 + $0xb8] sm:$0xff] %v920
        %969 = vst [vmem:[#allocation2 + $0xd0] sm:$0xff] %v921
        %970 = vst [vmem:[#allocation2 + $0xe8] sm:$0xff] %v922
        %971 = vst [vmem:[#allocation2 + $0x100] sm:$0xff] %v923
        %972 = vst [vmem:[#allocation2 + $0x118] sm:$0xff] %v924
        %973 = vst [vmem:[#allocation2 + $0x130] sm:$0xff] %v925
        %974 = vst [vmem:[#allocation2 + $0x148] sm:$0xff] %v926
        %975 = vst [vmem:[#allocation2 + $0x160] sm:$0xff] %v927
        %976 = vst [vmem:[#allocation2 + $0x178] sm:$0xff] %v928
        %977 = vst [vmem:[#allocation2 + $0x190] sm:$0xff] %v945
        %978 = vst [vmem:[#allocation2 + $0x1a8] sm:$0xff] %v946
        %979 = vst [vmem:[#allocation2 + $0x1c0] sm:$0xff] %v947
        %980 = vst [vmem:[#allocation2 + $0x1d8] sm:$0xff] %v948
        %981 = vst [vmem:[#allocation2 + $0x1f0] sm:$0xff] %v949
        %982 = vst [vmem:[#allocation2 + $0x208] sm:$0xff] %v950
        %983 = vst [vmem:[#allocation2 + $0x220] sm:$0xff] %v951
        %984 = vst [vmem:[#allocation2 + $0x238] sm:$0xff] %v952
        %985 = vst [vmem:[#allocation2 + $0x250] sm:$0xff] %v953
        %986 = vst [vmem:[#allocation2 + $0x268] sm:$0xff] %v954
        %987 = vst [vmem:[#allocation2 + $0x280] sm:$0xff] %v955
        %988 = vst [vmem:[#allocation2 + $0x298] sm:$0xff] %v956
        %989 = vst [vmem:[#allocation2 + $0x2b0] sm:$0xff] %v957
        %990 = vst [vmem:[#allocation2 + $0x2c8] sm:$0xff] %v958
        %991 = vst [vmem:[#allocation2 + $0x2e0] sm:$0xff] %v959
        %992 = vst [vmem:[#allocation2 + $0x2f8] sm:$0xff] %v960
        %v993 = vld [vmem:[#allocation2] sm:$0xff]
        %v994 = vld [vmem:[#allocation2 + $0x8] sm:$0xff]
        %v995 = vld [vmem:[#allocation2 + $0x10] sm:$0xff]
        %v996 = vld [vmem:[#allocation2 + $0x18] sm:$0xff]
        %v997 = vld [vmem:[#allocation2 + $0x20] sm:$0xff]
        %v998 = vld [vmem:[#allocation2 + $0x28] sm:$0xff]
        %v999 = vld [vmem:[#allocation2 + $0x30] sm:$0xff]
        %v1000 = vld [vmem:[#allocation2 + $0x38] sm:$0xff]
        %v1001 = vld [vmem:[#allocation2 + $0x40] sm:$0xff]
        %v1002 = vld [vmem:[#allocation2 + $0x48] sm:$0xff]
        %v1003 = vld [vmem:[#allocation2 + $0x50] sm:$0xff]
        %v1004 = vld [vmem:[#allocation2 + $0x58] sm:$0xff]
        %v1005 = vld [vmem:[#allocation2 + $0x60] sm:$0xff]
        %v1006 = vld [vmem:[#allocation2 + $0x68] sm:$0xff]
        %v1007 = vld [vmem:[#allocation2 + $0x70] sm:$0xff]
        %v1008 = vld [vmem:[#allocation2 + $0x78] sm:$0xff]
        %v1009 = vld [vmem:[#allocation2 + $0x80] sm:$0xff]
        %v1010 = vld [vmem:[#allocation2 + $0x88] sm:$0xff]
        %v1011 = vld [vmem:[#allocation2 + $0x90] sm:$0xff]
        %v1012 = vld [vmem:[#allocation2 + $0x98] sm:$0xff]
        %v1013 = vld [vmem:[#allocation2 + $0xa0] sm:$0xff]
        %v1014 = vld [vmem:[#allocation2 + $0xa8] sm:$0xff]
        %v1015 = vld [vmem:[#allocation2 + $0xb0] sm:$0xff]
        %v1016 = vld [vmem:[#allocation2 + $0xb8] sm:$0xff]
        %v1017 = vld [vmem:[#allocation2 + $0xc0] sm:$0xff]
        %v1018 = vld [vmem:[#allocation2 + $0xc8] sm:$0xff]
        %v1019 = vld [vmem:[#allocation2 + $0xd0] sm:$0xff]
        %v1020 = vld [vmem:[#allocation2 + $0xd8] sm:$0xff]
        %v1021 = vld [vmem:[#allocation2 + $0xe0] sm:$0xff]
        %v1022 = vld [vmem:[#allocation2 + $0xe8] sm:$0xff]
        %v1023 = vld [vmem:[#allocation2 + $0xf0] sm:$0xff]
        %v1024 = vld [vmem:[#allocation2 + $0xf8] sm:$0xff]
        %v1025 = vld [vmem:[#allocation2 + $0x100] sm:$0xff]
        %v1026 = vld [vmem:[#allocation2 + $0x108] sm:$0xff]
        %v1027 = vld [vmem:[#allocation2 + $0x110] sm:$0xff]
        %v1028 = vld [vmem:[#allocation2 + $0x118] sm:$0xff]
        %v1029 = vld [vmem:[#allocation2 + $0x120] sm:$0xff]
        %v1030 = vld [vmem:[#allocation2 + $0x128] sm:$0xff]
        %v1031 = vld [vmem:[#allocation2 + $0x130] sm:$0xff]
        %v1032 = vld [vmem:[#allocation2 + $0x138] sm:$0xff]
        %v1033 = vld [vmem:[#allocation2 + $0x140] sm:$0xff]
        %v1034 = vld [vmem:[#allocation2 + $0x148] sm:$0xff]
        %v1035 = vld [vmem:[#allocation2 + $0x150] sm:$0xff]
        %v1036 = vld [vmem:[#allocation2 + $0x158] sm:$0xff]
        %v1037 = vld [vmem:[#allocation2 + $0x160] sm:$0xff]
        %v1038 = vld [vmem:[#allocation2 + $0x168] sm:$0xff]
        %v1039 = vld [vmem:[#allocation2 + $0x170] sm:$0xff]
        %v1040 = vld [vmem:[#allocation2 + $0x178] sm:$0xff]
        %v1041 = vld [vmem:[#allocation2 + $0x180] sm:$0xff]
        %v1042 = vld [vmem:[#allocation2 + $0x188] sm:$0xff]
        %v1043 = vld [vmem:[#allocation2 + $0x190] sm:$0xff]
        %v1044 = vld [vmem:[#allocation2 + $0x198] sm:$0xff]
        %v1045 = vld [vmem:[#allocation2 + $0x1a0] sm:$0xff]
        %v1046 = vld [vmem:[#allocation2 + $0x1a8] sm:$0xff]
        %v1047 = vld [vmem:[#allocation2 + $0x1b0] sm:$0xff]
        %v1048 = vld [vmem:[#allocation2 + $0x1b8] sm:$0xff]
        %v1049 = vld [vmem:[#allocation2 + $0x1c0] sm:$0xff]
        %v1050 = vld [vmem:[#allocation2 + $0x1c8] sm:$0xff]
        %v1051 = vld [vmem:[#allocation2 + $0x1d0] sm:$0xff]
        %v1052 = vld [vmem:[#allocation2 + $0x1d8] sm:$0xff]
        %v1053 = vld [vmem:[#allocation2 + $0x1e0] sm:$0xff]
        %v1054 = vld [vmem:[#allocation2 + $0x1e8] sm:$0xff]
        %v1055 = vld [vmem:[#allocation2 + $0x1f0] sm:$0xff]
        %v1056 = vld [vmem:[#allocation2 + $0x1f8] sm:$0xff]
        %v1057 = vld [vmem:[#allocation2 + $0x200] sm:$0xff]
        %v1058 = vld [vmem:[#allocation2 + $0x208] sm:$0xff]
        %v1059 = vld [vmem:[#allocation2 + $0x210] sm:$0xff]
        %v1060 = vld [vmem:[#allocation2 + $0x218] sm:$0xff]
        %v1061 = vld [vmem:[#allocation2 + $0x220] sm:$0xff]
        %v1062 = vld [vmem:[#allocation2 + $0x228] sm:$0xff]
        %v1063 = vld [vmem:[#allocation2 + $0x230] sm:$0xff]
        %v1064 = vld [vmem:[#allocation2 + $0x238] sm:$0xff]
        %v1065 = vld [vmem:[#allocation2 + $0x240] sm:$0xff]
        %v1066 = vld [vmem:[#allocation2 + $0x248] sm:$0xff]
        %v1067 = vld [vmem:[#allocation2 + $0x250] sm:$0xff]
        %v1068 = vld [vmem:[#allocation2 + $0x258] sm:$0xff]
        %v1069 = vld [vmem:[#allocation2 + $0x260] sm:$0xff]
        %v1070 = vld [vmem:[#allocation2 + $0x268] sm:$0xff]
        %v1071 = vld [vmem:[#allocation2 + $0x270] sm:$0xff]
        %v1072 = vld [vmem:[#allocation2 + $0x278] sm:$0xff]
        %v1073 = vld [vmem:[#allocation2 + $0x280] sm:$0xff]
        %v1074 = vld [vmem:[#allocation2 + $0x288] sm:$0xff]
        %v1075 = vld [vmem:[#allocation2 + $0x290] sm:$0xff]
        %v1076 = vld [vmem:[#allocation2 + $0x298] sm:$0xff]
        %v1077 = vld [vmem:[#allocation2 + $0x2a0] sm:$0xff]
        %v1078 = vld [vmem:[#allocation2 + $0x2a8] sm:$0xff]
        %v1079 = vld [vmem:[#allocation2 + $0x2b0] sm:$0xff]
        %v1080 = vld [vmem:[#allocation2 + $0x2b8] sm:$0xff]
        %v1081 = vld [vmem:[#allocation2 + $0x2c0] sm:$0xff]
        %v1082 = vld [vmem:[#allocation2 + $0x2c8] sm:$0xff]
        %v1083 = vld [vmem:[#allocation2 + $0x2d0] sm:$0xff]
        %v1084 = vld [vmem:[#allocation2 + $0x2d8] sm:$0xff]
        %v1085 = vld [vmem:[#allocation2 + $0x2e0] sm:$0xff]
        %v1086 = vld [vmem:[#allocation2 + $0x2e8] sm:$0xff]
        %v1087 = vld [vmem:[#allocation2 + $0x2f0] sm:$0xff]
        %v1088 = vld [vmem:[#allocation2 + $0x2f8] sm:$0xff]
        %v1089 = vld [vmem:[#allocation3] sm:$0xff]
        %v1090 = vld [vmem:[#allocation3 + $0x8] sm:$0xff]
        %v1091 = vld [vmem:[#allocation3 + $0x10] sm:$0xff]
        %v1092 = vld [vmem:[#allocation3 + $0x18] sm:$0xff]
        %v1093 = vld [vmem:[#allocation3 + $0x20] sm:$0xff]
        %v1094 = vld [vmem:[#allocation3 + $0x28] sm:$0xff]
        %v1095 = vld [vmem:[#allocation3 + $0x30] sm:$0xff]
        %v1096 = vld [vmem:[#allocation3 + $0x38] sm:$0xff]
        %v1097 = vld [vmem:[#allocation3 + $0x40] sm:$0xff]
        %v1098 = vld [vmem:[#allocation3 + $0x48] sm:$0xff]
        %v1099 = vld [vmem:[#allocation3 + $0x50] sm:$0xff]
        %v1100 = vld [vmem:[#allocation3 + $0x58] sm:$0xff]
        %v1101 = vld [vmem:[#allocation3 + $0x60] sm:$0xff]
        %v1102 = vld [vmem:[#allocation3 + $0x68] sm:$0xff]
        %v1103 = vld [vmem:[#allocation3 + $0x70] sm:$0xff]
        %v1104 = vld [vmem:[#allocation3 + $0x78] sm:$0xff]
        %v1105 = vld [vmem:[#allocation3 + $0x80] sm:$0xff]
        %v1106 = vld [vmem:[#allocation3 + $0x88] sm:$0xff]
        %v1107 = vld [vmem:[#allocation3 + $0x90] sm:$0xff]
        %v1108 = vld [vmem:[#allocation3 + $0x98] sm:$0xff]
        %v1109 = vld [vmem:[#allocation3 + $0xa0] sm:$0xff]
        %v1110 = vld [vmem:[#allocation3 + $0xa8] sm:$0xff]
        %v1111 = vld [vmem:[#allocation3 + $0xb0] sm:$0xff]
        %v1112 = vld [vmem:[#allocation3 + $0xb8] sm:$0xff]
        %v1113 = vld [vmem:[#allocation3 + $0xc0] sm:$0xff]
        %v1114 = vld [vmem:[#allocation3 + $0xc8] sm:$0xff]
        %v1115 = vld [vmem:[#allocation3 + $0xd0] sm:$0xff]
        %v1116 = vld [vmem:[#allocation3 + $0xd8] sm:$0xff]
        %v1117 = vld [vmem:[#allocation3 + $0xe0] sm:$0xff]
        %v1118 = vld [vmem:[#allocation3 + $0xe8] sm:$0xff]
        %v1119 = vld [vmem:[#allocation3 + $0xf0] sm:$0xff]
        %v1120 = vld [vmem:[#allocation3 + $0xf8] sm:$0xff]
        %v1121 = vld [vmem:[#allocation3 + $0x100] sm:$0xff]
        %v1122 = vld [vmem:[#allocation3 + $0x108] sm:$0xff]
        %v1123 = vld [vmem:[#allocation3 + $0x110] sm:$0xff]
        %v1124 = vld [vmem:[#allocation3 + $0x118] sm:$0xff]
        %v1125 = vld [vmem:[#allocation3 + $0x120] sm:$0xff]
        %v1126 = vld [vmem:[#allocation3 + $0x128] sm:$0xff]
        %v1127 = vld [vmem:[#allocation3 + $0x130] sm:$0xff]
        %v1128 = vld [vmem:[#allocation3 + $0x138] sm:$0xff]
        %v1129 = vld [vmem:[#allocation3 + $0x140] sm:$0xff]
        %v1130 = vld [vmem:[#allocation3 + $0x148] sm:$0xff]
        %v1131 = vld [vmem:[#allocation3 + $0x150] sm:$0xff]
        %v1132 = vld [vmem:[#allocation3 + $0x158] sm:$0xff]
        %v1133 = vld [vmem:[#allocation3 + $0x160] sm:$0xff]
        %v1134 = vld [vmem:[#allocation3 + $0x168] sm:$0xff]
        %v1135 = vld [vmem:[#allocation3 + $0x170] sm:$0xff]
        %v1136 = vld [vmem:[#allocation3 + $0x178] sm:$0xff]
        %1137 = vmatpush.msra.mxu0 %v1104
        %1138 = vmatpush.msra.mxu0 %v1103
        %1139 = vmatpush.msra.mxu0 %v1102
        %1140 = vmatpush.msra.mxu0 %v1101
        %1141 = vmatpush.msra.mxu0 %v1100
        %1142 = vmatpush.msra.mxu0 %v1099
        %1143 = vmatpush.msra.mxu0 %v1098
        %1144 = vmatpush.msra.mxu0 %v1097
        %1145 = vmatpush.msra.mxu0 %v1096
        %1146 = vmatpush.msra.mxu0 %v1095
        %1147 = vmatpush.msra.mxu0 %v1094
        %1148 = vmatpush.msra.mxu0 %v1093
        %1149 = vmatpush.msra.mxu0 %v1092
        %1150 = vmatpush.msra.mxu0 %v1091
        %1151 = vmatpush.msra.mxu0 %v1090
        %1152 = vmatpush.msra.mxu0 %v1089
        %1153 = vmatmul.f32.gmra.mxu0 %v993
        %v1154 = vpop.f32.mrf.mxu0
        %v1155 = vadd.f32 0.0, %v1154
        %1156 = vmatmul.f32.gmra.mxu0 %v996
        %v1157 = vpop.f32.mrf.mxu0
        %v1158 = vadd.f32 0.0, %v1157
        %1159 = vmatmul.f32.gmra.mxu0 %v999
        %v1160 = vpop.f32.mrf.mxu0
        %v1161 = vadd.f32 0.0, %v1160
        %1162 = vmatmul.f32.gmra.mxu0 %v1002
        %v1163 = vpop.f32.mrf.mxu0
        %v1164 = vadd.f32 0.0, %v1163
        %1165 = vmatmul.f32.gmra.mxu0 %v1005
        %v1166 = vpop.f32.mrf.mxu0
        %v1167 = vadd.f32 0.0, %v1166
        %1168 = vmatmul.f32.gmra.mxu0 %v1008
        %v1169 = vpop.f32.mrf.mxu0
        %v1170 = vadd.f32 0.0, %v1169
        %1171 = vmatmul.f32.gmra.mxu0 %v1011
        %v1172 = vpop.f32.mrf.mxu0
        %v1173 = vadd.f32 0.0, %v1172
        %1174 = vmatmul.f32.gmra.mxu0 %v1014
        %v1175 = vpop.f32.mrf.mxu0
        %v1176 = vadd.f32 0.0, %v1175
        %1177 = vmatmul.f32.gmra.mxu0 %v1017
        %v1178 = vpop.f32.mrf.mxu0
        %v1179 = vadd.f32 0.0, %v1178
        %1180 = vmatmul.f32.gmra.mxu0 %v1020
        %v1181 = vpop.f32.mrf.mxu0
        %v1182 = vadd.f32 0.0, %v1181
        %1183 = vmatmul.f32.gmra.mxu0 %v1023
        %v1184 = vpop.f32.mrf.mxu0
        %v1185 = vadd.f32 0.0, %v1184
        %1186 = vmatmul.f32.gmra.mxu0 %v1026
        %v1187 = vpop.f32.mrf.mxu0
        %v1188 = vadd.f32 0.0, %v1187
        %1189 = vmatmul.f32.gmra.mxu0 %v1029
        %v1190 = vpop.f32.mrf.mxu0
        %v1191 = vadd.f32 0.0, %v1190
        %1192 = vmatmul.f32.gmra.mxu0 %v1032
        %v1193 = vpop.f32.mrf.mxu0
        %v1194 = vadd.f32 0.0, %v1193
        %1195 = vmatmul.f32.gmra.mxu0 %v1035
        %v1196 = vpop.f32.mrf.mxu0
        %v1197 = vadd.f32 0.0, %v1196
        %1198 = vmatmul.f32.gmra.mxu0 %v1038
        %v1199 = vpop.f32.mrf.mxu0
        %v1200 = vadd.f32 0.0, %v1199
        %1201 = vmatmul.f32.gmra.mxu0 %v1041
        %v1202 = vpop.f32.mrf.mxu0
        %v1203 = vadd.f32 0.0, %v1202
        %1204 = vmatmul.f32.gmra.mxu0 %v1044
        %v1205 = vpop.f32.mrf.mxu0
        %v1206 = vadd.f32 0.0, %v1205
        %1207 = vmatmul.f32.gmra.mxu0 %v1047
        %v1208 = vpop.f32.mrf.mxu0
        %v1209 = vadd.f32 0.0, %v1208
        %1210 = vmatmul.f32.gmra.mxu0 %v1050
        %v1211 = vpop.f32.mrf.mxu0
        %v1212 = vadd.f32 0.0, %v1211
        %1213 = vmatmul.f32.gmra.mxu0 %v1053
        %v1214 = vpop.f32.mrf.mxu0
        %v1215 = vadd.f32 0.0, %v1214
        %1216 = vmatmul.f32.gmra.mxu0 %v1056
        %v1217 = vpop.f32.mrf.mxu0
        %v1218 = vadd.f32 0.0, %v1217
        %1219 = vmatmul.f32.gmra.mxu0 %v1059
        %v1220 = vpop.f32.mrf.mxu0
        %v1221 = vadd.f32 0.0, %v1220
        %1222 = vmatmul.f32.gmra.mxu0 %v1062
        %v1223 = vpop.f32.mrf.mxu0
        %v1224 = vadd.f32 0.0, %v1223
        %1225 = vmatmul.f32.gmra.mxu0 %v1065
        %v1226 = vpop.f32.mrf.mxu0
        %v1227 = vadd.f32 0.0, %v1226
        %1228 = vmatmul.f32.gmra.mxu0 %v1068
        %v1229 = vpop.f32.mrf.mxu0
        %v1230 = vadd.f32 0.0, %v1229
        %1231 = vmatmul.f32.gmra.mxu0 %v1071
        %v1232 = vpop.f32.mrf.mxu0
        %v1233 = vadd.f32 0.0, %v1232
        %1234 = vmatmul.f32.gmra.mxu0 %v1074
        %v1235 = vpop.f32.mrf.mxu0
        %v1236 = vadd.f32 0.0, %v1235
        %1237 = vmatmul.f32.gmra.mxu0 %v1077
        %v1238 = vpop.f32.mrf.mxu0
        %v1239 = vadd.f32 0.0, %v1238
        %1240 = vmatmul.f32.gmra.mxu0 %v1080
        %v1241 = vpop.f32.mrf.mxu0
        %v1242 = vadd.f32 0.0, %v1241
        %1243 = vmatmul.f32.gmra.mxu0 %v1083
        %v1244 = vpop.f32.mrf.mxu0
        %v1245 = vadd.f32 0.0, %v1244
        %1246 = vmatmul.f32.gmra.mxu0 %v1086
        %v1247 = vpop.f32.mrf.mxu0
        %v1248 = vadd.f32 0.0, %v1247
        %1249 = vdwg.mxu0
        %1250 = vmatpush.msra.mxu0 %v1120
        %1251 = vmatpush.msra.mxu0 %v1119
        %1252 = vmatpush.msra.mxu0 %v1118
        %1253 = vmatpush.msra.mxu0 %v1117
        %1254 = vmatpush.msra.mxu0 %v1116
        %1255 = vmatpush.msra.mxu0 %v1115
        %1256 = vmatpush.msra.mxu0 %v1114
        %1257 = vmatpush.msra.mxu0 %v1113
        %1258 = vmatpush.msra.mxu0 %v1112
        %1259 = vmatpush.msra.mxu0 %v1111
        %1260 = vmatpush.msra.mxu0 %v1110
        %1261 = vmatpush.msra.mxu0 %v1109
        %1262 = vmatpush.msra.mxu0 %v1108
        %1263 = vmatpush.msra.mxu0 %v1107
        %1264 = vmatpush.msra.mxu0 %v1106
        %1265 = vmatpush.msra.mxu0 %v1105
        %1266 = vmatmul.f32.gmra.mxu0 %v994
        %v1267 = vpop.f32.mrf.mxu0
        %v1268 = vadd.f32 %v1155, %v1267
        %1269 = vmatmul.f32.gmra.mxu0 %v997
        %v1270 = vpop.f32.mrf.mxu0
        %v1271 = vadd.f32 %v1158, %v1270
        %1272 = vmatmul.f32.gmra.mxu0 %v1000
        %v1273 = vpop.f32.mrf.mxu0
        %v1274 = vadd.f32 %v1161, %v1273
        %1275 = vmatmul.f32.gmra.mxu0 %v1003
        %v1276 = vpop.f32.mrf.mxu0
        %v1277 = vadd.f32 %v1164, %v1276
        %1278 = vmatmul.f32.gmra.mxu0 %v1006
        %v1279 = vpop.f32.mrf.mxu0
        %v1280 = vadd.f32 %v1167, %v1279
        %1281 = vmatmul.f32.gmra.mxu0 %v1009
        %v1282 = vpop.f32.mrf.mxu0
        %v1283 = vadd.f32 %v1170, %v1282
        %1284 = vmatmul.f32.gmra.mxu0 %v1012
        %v1285 = vpop.f32.mrf.mxu0
        %v1286 = vadd.f32 %v1173, %v1285
        %1287 = vmatmul.f32.gmra.mxu0 %v1015
        %v1288 = vpop.f32.mrf.mxu0
        %v1289 = vadd.f32 %v1176, %v1288
        %1290 = vmatmul.f32.gmra.mxu0 %v1018
        %v1291 = vpop.f32.mrf.mxu0
        %v1292 = vadd.f32 %v1179, %v1291
        %1293 = vmatmul.f32.gmra.mxu0 %v1021
        %v1294 = vpop.f32.mrf.mxu0
        %v1295 = vadd.f32 %v1182, %v1294
        %1296 = vmatmul.f32.gmra.mxu0 %v1024
        %v1297 = vpop.f32.mrf.mxu0
        %v1298 = vadd.f32 %v1185, %v1297
        %1299 = vmatmul.f32.gmra.mxu0 %v1027
        %v1300 = vpop.f32.mrf.mxu0
        %v1301 = vadd.f32 %v1188, %v1300
        %1302 = vmatmul.f32.gmra.mxu0 %v1030
        %v1303 = vpop.f32.mrf.mxu0
        %v1304 = vadd.f32 %v1191, %v1303
        %1305 = vmatmul.f32.gmra.mxu0 %v1033
        %v1306 = vpop.f32.mrf.mxu0
        %v1307 = vadd.f32 %v1194, %v1306
        %1308 = vmatmul.f32.gmra.mxu0 %v1036
        %v1309 = vpop.f32.mrf.mxu0
        %v1310 = vadd.f32 %v1197, %v1309
        %1311 = vmatmul.f32.gmra.mxu0 %v1039
        %v1312 = vpop.f32.mrf.mxu0
        %v1313 = vadd.f32 %v1200, %v1312
        %1314 = vmatmul.f32.gmra.mxu0 %v1042
        %v1315 = vpop.f32.mrf.mxu0
        %v1316 = vadd.f32 %v1203, %v1315
        %1317 = vmatmul.f32.gmra.mxu0 %v1045
        %v1318 = vpop.f32.mrf.mxu0
        %v1319 = vadd.f32 %v1206, %v1318
        %1320 = vmatmul.f32.gmra.mxu0 %v1048
        %v1321 = vpop.f32.mrf.mxu0
        %v1322 = vadd.f32 %v1209, %v1321
        %1323 = vmatmul.f32.gmra.mxu0 %v1051
        %v1324 = vpop.f32.mrf.mxu0
        %v1325 = vadd.f32 %v1212, %v1324
        %1326 = vmatmul.f32.gmra.mxu0 %v1054
        %v1327 = vpop.f32.mrf.mxu0
        %v1328 = vadd.f32 %v1215, %v1327
        %1329 = vmatmul.f32.gmra.mxu0 %v1057
        %v1330 = vpop.f32.mrf.mxu0
        %v1331 = vadd.f32 %v1218, %v1330
        %1332 = vmatmul.f32.gmra.mxu0 %v1060
        %v1333 = vpop.f32.mrf.mxu0
        %v1334 = vadd.f32 %v1221, %v1333
        %1335 = vmatmul.f32.gmra.mxu0 %v1063
        %v1336 = vpop.f32.mrf.mxu0
        %v1337 = vadd.f32 %v1224, %v1336
        %1338 = vmatmul.f32.gmra.mxu0 %v1066
        %v1339 = vpop.f32.mrf.mxu0
        %v1340 = vadd.f32 %v1227, %v1339
        %1341 = vmatmul.f32.gmra.mxu0 %v1069
        %v1342 = vpop.f32.mrf.mxu0
        %v1343 = vadd.f32 %v1230, %v1342
        %1344 = vmatmul.f32.gmra.mxu0 %v1072
        %v1345 = vpop.f32.mrf.mxu0
        %v1346 = vadd.f32 %v1233, %v1345
        %1347 = vmatmul.f32.gmra.mxu0 %v1075
        %v1348 = vpop.f32.mrf.mxu0
        %v1349 = vadd.f32 %v1236, %v1348
        %1350 = vmatmul.f32.gmra.mxu0 %v1078
        %v1351 = vpop.f32.mrf.mxu0
        %v1352 = vadd.f32 %v1239, %v1351
        %1353 = vmatmul.f32.gmra.mxu0 %v1081
        %v1354 = vpop.f32.mrf.mxu0
        %v1355 = vadd.f32 %v1242, %v1354
        %1356 = vmatmul.f32.gmra.mxu0 %v1084
        %v1357 = vpop.f32.mrf.mxu0
        %v1358 = vadd.f32 %v1245, %v1357
        %1359 = vmatmul.f32.gmra.mxu0 %v1087
        %v1360 = vpop.f32.mrf.mxu0
        %v1361 = vadd.f32 %v1248, %v1360
        %1362 = vdwg.mxu0
        %1363 = vmatpush.msra.mxu0 %v1136
        %1364 = vmatpush.msra.mxu0 %v1135
        %1365 = vmatpush.msra.mxu0 %v1134
        %1366 = vmatpush.msra.mxu0 %v1133
        %1367 = vmatpush.msra.mxu0 %v1132
        %1368 = vmatpush.msra.mxu0 %v1131
        %1369 = vmatpush.msra.mxu0 %v1130
        %1370 = vmatpush.msra.mxu0 %v1129
        %1371 = vmatpush.msra.mxu0 %v1128
        %1372 = vmatpush.msra.mxu0 %v1127
        %1373 = vmatpush.msra.mxu0 %v1126
        %1374 = vmatpush.msra.mxu0 %v1125
        %1375 = vmatpush.msra.mxu0 %v1124
        %1376 = vmatpush.msra.mxu0 %v1123
        %1377 = vmatpush.msra.mxu0 %v1122
        %1378 = vmatpush.msra.mxu0 %v1121
        %1379 = vmatmul.f32.gmra.mxu0 %v995
        %v1380 = vpop.f32.mrf.mxu0
        %v1381 = vadd.f32 %v1268, %v1380
        %1382 = vmatmul.f32.gmra.mxu0 %v998
        %v1383 = vpop.f32.mrf.mxu0
        %v1384 = vadd.f32 %v1271, %v1383
        %1385 = vmatmul.f32.gmra.mxu0 %v1001
        %v1386 = vpop.f32.mrf.mxu0
        %v1387 = vadd.f32 %v1274, %v1386
        %1388 = vmatmul.f32.gmra.mxu0 %v1004
        %v1389 = vpop.f32.mrf.mxu0
        %v1390 = vadd.f32 %v1277, %v1389
        %1391 = vmatmul.f32.gmra.mxu0 %v1007
        %v1392 = vpop.f32.mrf.mxu0
        %v1393 = vadd.f32 %v1280, %v1392
        %1394 = vmatmul.f32.gmra.mxu0 %v1010
        %v1395 = vpop.f32.mrf.mxu0
        %v1396 = vadd.f32 %v1283, %v1395
        %1397 = vmatmul.f32.gmra.mxu0 %v1013
        %v1398 = vpop.f32.mrf.mxu0
        %v1399 = vadd.f32 %v1286, %v1398
        %1400 = vmatmul.f32.gmra.mxu0 %v1016
        %v1401 = vpop.f32.mrf.mxu0
        %v1402 = vadd.f32 %v1289, %v1401
        %1403 = vmatmul.f32.gmra.mxu0 %v1019
        %v1404 = vpop.f32.mrf.mxu0
        %v1405 = vadd.f32 %v1292, %v1404
        %1406 = vmatmul.f32.gmra.mxu0 %v1022
        %v1407 = vpop.f32.mrf.mxu0
        %v1408 = vadd.f32 %v1295, %v1407
        %1409 = vmatmul.f32.gmra.mxu0 %v1025
        %v1410 = vpop.f32.mrf.mxu0
        %v1411 = vadd.f32 %v1298, %v1410
        %1412 = vmatmul.f32.gmra.mxu0 %v1028
        %v1413 = vpop.f32.mrf.mxu0
        %v1414 = vadd.f32 %v1301, %v1413
        %1415 = vmatmul.f32.gmra.mxu0 %v1031
        %v1416 = vpop.f32.mrf.mxu0
        %v1417 = vadd.f32 %v1304, %v1416
        %1418 = vmatmul.f32.gmra.mxu0 %v1034
        %v1419 = vpop.f32.mrf.mxu0
        %v1420 = vadd.f32 %v1307, %v1419
        %1421 = vmatmul.f32.gmra.mxu0 %v1037
        %v1422 = vpop.f32.mrf.mxu0
        %v1423 = vadd.f32 %v1310, %v1422
        %1424 = vmatmul.f32.gmra.mxu0 %v1040
        %v1425 = vpop.f32.mrf.mxu0
        %v1426 = vadd.f32 %v1313, %v1425
        %1427 = vmatmul.f32.gmra.mxu0 %v1043
        %v1428 = vpop.f32.mrf.mxu0
        %v1429 = vadd.f32 %v1316, %v1428
        %1430 = vmatmul.f32.gmra.mxu0 %v1046
        %v1431 = vpop.f32.mrf.mxu0
        %v1432 = vadd.f32 %v1319, %v1431
        %1433 = vmatmul.f32.gmra.mxu0 %v1049
        %v1434 = vpop.f32.mrf.mxu0
        %v1435 = vadd.f32 %v1322, %v1434
        %1436 = vmatmul.f32.gmra.mxu0 %v1052
        %v1437 = vpop.f32.mrf.mxu0
        %v1438 = vadd.f32 %v1325, %v1437
        %1439 = vmatmul.f32.gmra.mxu0 %v1055
        %v1440 = vpop.f32.mrf.mxu0
        %v1441 = vadd.f32 %v1328, %v1440
        %1442 = vmatmul.f32.gmra.mxu0 %v1058
        %v1443 = vpop.f32.mrf.mxu0
        %v1444 = vadd.f32 %v1331, %v1443
        %1445 = vmatmul.f32.gmra.mxu0 %v1061
        %v1446 = vpop.f32.mrf.mxu0
        %v1447 = vadd.f32 %v1334, %v1446
        %1448 = vmatmul.f32.gmra.mxu0 %v1064
        %v1449 = vpop.f32.mrf.mxu0
        %v1450 = vadd.f32 %v1337, %v1449
        %1451 = vmatmul.f32.gmra.mxu0 %v1067
        %v1452 = vpop.f32.mrf.mxu0
        %v1453 = vadd.f32 %v1340, %v1452
        %1454 = vmatmul.f32.gmra.mxu0 %v1070
        %v1455 = vpop.f32.mrf.mxu0
        %v1456 = vadd.f32 %v1343, %v1455
        %1457 = vmatmul.f32.gmra.mxu0 %v1073
        %v1458 = vpop.f32.mrf.mxu0
        %v1459 = vadd.f32 %v1346, %v1458
        %1460 = vmatmul.f32.gmra.mxu0 %v1076
        %v1461 = vpop.f32.mrf.mxu0
        %v1462 = vadd.f32 %v1349, %v1461
        %1463 = vmatmul.f32.gmra.mxu0 %v1079
        %v1464 = vpop.f32.mrf.mxu0
        %v1465 = vadd.f32 %v1352, %v1464
        %1466 = vmatmul.f32.gmra.mxu0 %v1082
        %v1467 = vpop.f32.mrf.mxu0
        %v1468 = vadd.f32 %v1355, %v1467
        %1469 = vmatmul.f32.gmra.mxu0 %v1085
        %v1470 = vpop.f32.mrf.mxu0
        %v1471 = vadd.f32 %v1358, %v1470
        %1472 = vmatmul.f32.gmra.mxu0 %v1088
        %v1473 = vpop.f32.mrf.mxu0
        %v1474 = vadd.f32 %v1361, %v1473
        %1475 = vdwg.mxu0
        %1476 = vxpose.xlu0.b32.start [1/16] %v1381, 128
        %1477 = vxpose.xlu0.b32.cont [2/16] %v1384, 128
        %1478 = vxpose.xlu0.b32.cont [3/16] %v1387, 128
        %1479 = vxpose.xlu0.b32.cont [4/16] %v1390, 128
        %1480 = vxpose.xlu0.b32.cont [5/16] %v1393, 128
        %1481 = vxpose.xlu0.b32.cont [6/16] %v1396, 128
        %1482 = vxpose.xlu0.b32.cont [7/16] %v1399, 128
        %1483 = vxpose.xlu0.b32.cont [8/16] %v1402, 128
        %1484 = vxpose.xlu0.b32.cont [9/16] %v1405, 128
        %1485 = vxpose.xlu0.b32.cont [10/16] %v1408, 128
        %1486 = vxpose.xlu0.b32.cont [11/16] %v1411, 128
        %1487 = vxpose.xlu0.b32.cont [12/16] %v1414, 128
        %1488 = vxpose.xlu0.b32.cont [13/16] %v1417, 128
        %1489 = vxpose.xlu0.b32.cont [14/16] %v1420, 128
        %1490 = vxpose.xlu0.b32.cont [15/16] %v1423, 128
        %1491 = vxpose.xlu0.b32.end [16/16] %v1426, 128
        %v1492 = vpop.trf.xlu0
        %v1493 = vpop.trf.xlu0
        %v1494 = vpop.trf.xlu0
        %v1495 = vpop.trf.xlu0
        %v1496 = vpop.trf.xlu0
        %v1497 = vpop.trf.xlu0
        %v1498 = vpop.trf.xlu0
        %v1499 = vpop.trf.xlu0
        %v1500 = vpop.trf.xlu0
        %v1501 = vpop.trf.xlu0
        %v1502 = vpop.trf.xlu0
        %v1503 = vpop.trf.xlu0
        %v1504 = vpop.trf.xlu0
        %v1505 = vpop.trf.xlu0
        %v1506 = vpop.trf.xlu0
        %v1507 = vpop.trf.xlu0
        %1508 = vxpose.xlu0.b32.start [1/16] %v1429, 128
        %1509 = vxpose.xlu0.b32.cont [2/16] %v1432, 128
        %1510 = vxpose.xlu0.b32.cont [3/16] %v1435, 128
        %1511 = vxpose.xlu0.b32.cont [4/16] %v1438, 128
        %1512 = vxpose.xlu0.b32.cont [5/16] %v1441, 128
        %1513 = vxpose.xlu0.b32.cont [6/16] %v1444, 128
        %1514 = vxpose.xlu0.b32.cont [7/16] %v1447, 128
        %1515 = vxpose.xlu0.b32.cont [8/16] %v1450, 128
        %1516 = vxpose.xlu0.b32.cont [9/16] %v1453, 128
        %1517 = vxpose.xlu0.b32.cont [10/16] %v1456, 128
        %1518 = vxpose.xlu0.b32.cont [11/16] %v1459, 128
        %1519 = vxpose.xlu0.b32.cont [12/16] %v1462, 128
        %1520 = vxpose.xlu0.b32.cont [13/16] %v1465, 128
        %1521 = vxpose.xlu0.b32.cont [14/16] %v1468, 128
        %1522 = vxpose.xlu0.b32.cont [15/16] %v1471, 128
        %1523 = vxpose.xlu0.b32.end [16/16] %v1474, 128
        %v1524 = vpop.trf.xlu0
        %v1525 = vpop.trf.xlu0
        %v1526 = vpop.trf.xlu0
        %v1527 = vpop.trf.xlu0
        %v1528 = vpop.trf.xlu0
        %v1529 = vpop.trf.xlu0
        %v1530 = vpop.trf.xlu0
        %v1531 = vpop.trf.xlu0
        %v1532 = vpop.trf.xlu0
        %v1533 = vpop.trf.xlu0
        %v1534 = vpop.trf.xlu0
        %v1535 = vpop.trf.xlu0
        %v1536 = vpop.trf.xlu0
        %v1537 = vpop.trf.xlu0
        %v1538 = vpop.trf.xlu0
        %v1539 = vpop.trf.xlu0
        %v1540 = vld [vmem:[%s4] sm:$0xff]
        %1542 = vset.pattern.permute.xlu0 0
        %1543 = vperm.xlu0 %1542, %v1540
        %v1544 = vpop.permute.xlu0 %1543
        %v1546 = vadd.f32 %v1492, %v1544
        %v1547 = vadd.f32 %v1524, %v1544
        %v1548 = vmax.f32 %v1546, 0.0
        %v1549 = vmax.f32 %v1547, 0.0
        %1550 = vst [vmem:[%s261] sm:$0xff] %v1548
        %1551 = vst [vmem:[%s261 + $0x8] sm:$0xff] %v1549
        %s1552 = sand.u32 %s160, 1
        %s1553 = scalar_lea.sflag [#allocation5], %s1552
        %s1554 = sand.u32 %s160, 1
        %s1555 = smul.addr %s1554, 16
        %s1556 = scalar_lea.vmem [#allocation6], %s1555
        // Predicated region
        $region49: #{tpu_custom_call.1} parent=43 // pred_check
          %p1557 = pneg %p170
        $region50: #{tpu_custom_call.1} parent=43 // pred_check_branch
          %1559 = sbr.rel (%p1557) target = $region52
        $region51: #{tpu_custom_call.1} parent=43 // pred_region
          %1561 = vsyncadd %s1553, 0
          %s1562 = smul.addr %s21, 2
          %s1563 = smul.addr %s1562, 8
          %s1564 = scalar_lea.hbm %s6, %s1563
          %s1566 = sshll.u32 %s1556, 4
          %s1567 = int_to_ptr.vmem [resolvable:$true] %s1566
          %s1568 = sshll.u32 %s1564, 4
          %s1569 = int_to_ptr.hbm [resolvable:$true] %s1568
          %1571 = dma.vmem_to_hbm [thread:$0]  %s1567, 256, %s1569, %s1553
        $region52: #{tpu_custom_call.1} parent=43 // pred_fallthru
          _
      $region44: #{tpu_custom_call.1} parent=5 // pred_fallthru
        _
      %p1572 = scmp.le.s32.totalorder 2, %s16
      // Predicated region
      $region53: #{tpu_custom_call.1} parent=5 // pred_check
        %p1573 = pneg %p1572
      $region54: #{tpu_custom_call.1} parent=5 // pred_check_branch
        %1575 = sbr.rel (%p1573) target = $region56
      $region55: #{tpu_custom_call.1} parent=5 // pred_region
        %s1576 = ssub.s32 %s16, 2
        // Predicated region
        $region57: #{tpu_custom_call.1} parent=55 // pred_check
          %p1577 = pneg %p176
        $region58: #{tpu_custom_call.1} parent=55 // pred_check_branch
          %1579 = sbr.rel (%p1577) target = $region60
        $region59: #{tpu_custom_call.1} parent=55 // pred_region
          %s1580 = sand.u32 %s161, 1
          %s1581 = scalar_lea.sflag [#allocation5], %s1580
          %s1582 = sand.u32 %s161, 1
          %s1583 = smul.addr %s1582, 16
          %s1584 = scalar_lea.vmem [#allocation6], %s1583
          %1586 = dma.done %s1581, 256
        $region60: #{tpu_custom_call.1} parent=55 // pred_fallthru
          _
      $region56: #{tpu_custom_call.1} parent=5 // pred_fallthru
        _
    $region6: #{tpu_custom_call.1} parent=1 // loop_footer
      %s20 = sadd.s32 1, %s16
    $region7: #{tpu_custom_call.1} parent=1 // loop_footer_branch
      %15 = sbr.rel target = $region3
    $region8: #{tpu_custom_call.1} parent=1 // loop_exit
      _
    %1587 = vsyncpa [#allocation4], 1
    %s1588 = scalar_lea.sflag [#allocation4], 1
    %1589 = vsyncpa %s1588, 1
    %1590 = vsyncpa [#allocation5], 1
    %s1591 = scalar_lea.sflag [#allocation5], 1
    %1592 = vsyncpa %s1591, 1

</llo_original>
